<compile_context>
chip_gen: v7x
topology: tpu7x:2x2x1
jax: 0.10.0
libtpu: 0.0.40
codegen_flags: <defaults>
</compile_context>

<pallas_src>
import jax
import jax.numpy as jnp
from jax.experimental import pallas as pl
from jax.experimental.pallas import tpu as pltpu

DECAY = 0.2
THRESH = 0.8
LOG_SIG_MIN = -20.0
LOG_SIG_MAX = 2.0
WINS = 15  # 5 state slices, each repeated 3x


def _pad8(n):
    return ((n + 7) // 8) * 8


def gaussian_policy_kernel(state_ref, lif_ref, ff_ref, head_ref, out_ref):
    """
    state_ref : VMEM f32[bb, 5, D]          (bb = batch tile)
    lif_ref   : SMEM f32[4]                 (lif_fc weights[0..2], bias)
    ff_ref    : VMEM f32[pad8(D+1), 3H]     rows 0..D-1 = [fc1|fc2|fc3].T, row D = fused bias
    head_ref  : VMEM f32[R, L]              3 row-sections (first layer / hidden / output),
                                            each = weight rows followed by one bias row.
                                            First-layer weights are pre-scaled by 1/WINS.
    out_ref   : VMEM f32[bb, 2A]            [:, :A] = mean, [:, A:] = clipped log_std
    """
    f32 = jnp.float32
    B = state_ref.shape[0]
    D = state_ref.shape[2]
    H3 = ff_ref.shape[1]
    H = H3 // 3
    H2 = 2 * H
    H4 = 4 * H
    A2 = out_ref.shape[1]
    A = A2 // 2

    # Static row offsets inside the head slab (must mirror the wrapper's packing).
    o1 = _pad8(H4 + 1)
    o2 = o1 + _pad8(H2 + 1)

    state = state_ref[...]
    w_ff = ff_ref[0:D, :]                                     # [D, 3H]
    b_ff = jnp.broadcast_to(ff_ref[D:D + 1, :], (B, H3))      # hoisted bias broadcast
    wl0, wl1, wl2, bl = lif_ref[0], lif_ref[1], lif_ref[2], lif_ref[3]

    # LIF state: channels 0..2 packed along lanes ([B, 3H]); channel 3 kept as [B, H].
    mem012 = jnp.zeros((B, H3), f32)
    mem3 = jnp.zeros((B, H), f32)
    spk012 = jnp.zeros((B, H3), jnp.bool_)
    spk3 = jnp.zeros((B, H), jnp.bool_)
    ssum012 = jnp.zeros((B, H3), f32)
    ssum3 = jnp.zeros((B, H), f32)

    # 15-step recurrence: each of the 5 state slices drives 3 consecutive steps, so the
    # channel-0..2 feed-forward drive is computed once per slice (5 MXU ops total).
    for i in range(5):
        xin = state[:, i, :]                                                   # [B, D]
        u_ff = jnp.dot(xin, w_ff, preferred_element_type=f32) + b_ff           # [B, 3H]
        for _rep in range(3):
            # lif_fc reads the *previous* membrane of channels 0..2
            u3 = (mem012[:, 0:H] * wl0 + mem012[:, H:H2] * wl1
                  + mem012[:, H2:H3] * wl2 + bl)                               # [B, H]
            # mem_update: new_mem = drive + (spike_prev ? 0 : mem * decay)  (exact rewrite)
            mem012 = u_ff + jnp.where(spk012, 0.0, mem012 * DECAY)
            spk012 = mem012 > THRESH
            ssum012 = ssum012 + spk012.astype(f32)
            mem3 = u3 + jnp.where(spk3, 0.0, mem3 * DECAY)
            spk3 = mem3 > THRESH
            ssum3 = ssum3 + spk3.astype(f32)

    # Fused heads. The time-mean 1/WINS is pre-folded into the first-layer weights and the
    # first matmul is split over the [ssum012 | ssum3] halves, so no lane concat and no
    # scale multiply are needed.  Layers 2/3 are block-diagonal (mean head in the left
    # column block, log_std head in the right one).
    w_h1a = head_ref[0:3 * H, 0:H2]          # [3H, 2H] rows for channels 0..2
    w_h1b = head_ref[3 * H:H4, 0:H2]         # [H, 2H]  rows for channel 3
    b_h1 = head_ref[H4:H4 + 1, 0:H2]
    w_h2 = head_ref[o1:o1 + H2, 0:H2]
    b_h2 = head_ref[o1 + H2:o1 + H2 + 1, 0:H2]
    w_out = head_ref[o2:o2 + H2, 0:A2]
    b_out = head_ref[o2 + H2:o2 + H2 + 1, 0:A2]

    y = (jnp.dot(ssum012, w_h1a, preferred_element_type=f32)
         + jnp.dot(ssum3, w_h1b, preferred_element_type=f32) + b_h1)
    y = jnp.maximum(y, 0.0)
    y = jnp.maximum(jnp.dot(y, w_h2, preferred_element_type=f32) + b_h2, 0.0)
    out = jnp.dot(y, w_out, preferred_element_type=f32) + b_out                 # [B, 2A]

    # Clip only the log_std lanes (right half) via a lane mask: one full-width store,
    # no slice + concat on the lane dim.
    lane = jax.lax.broadcasted_iota(jnp.int32, (B, A2), 1)
    out_ref[...] = jnp.where(lane < A, out,
                             jnp.clip(out, LOG_SIG_MIN, LOG_SIG_MAX))


# ------------------------- host-side parameter packing -------------------------
def _deinterleave(W, H):
    # W: [H_out, 4H] with flattened input index h*4 + k (PyTorch .view(B, -1) order).
    # Returns [4H, H_out] whose row index is k*H + h (the in-kernel channel-concat order).
    return jnp.concatenate([W[:, k::4] for k in range(4)], axis=1).T


def _block_diag(a, b):
    r1, c1 = a.shape
    r2, c2 = b.shape
    out = jnp.zeros((r1 + r2, c1 + c2), a.dtype)
    out = out.at[:r1, :c1].set(a)
    out = out.at[r1:, c1:].set(b)
    return out


def _section(W, b, rows, cols):
    # Weight on top, bias as the row right below it, zero-padded to [rows, cols].
    blk = jnp.zeros((rows, cols), jnp.float32)
    blk = blk.at[:W.shape[0], :W.shape[1]].set(W)
    blk = blk.at[W.shape[0], :b.shape[0]].set(b)
    return blk


def pack_params(p):
    H = p["fc1_w"].shape[0]
    D = p["fc1_w"].shape[1]
    A = p["mean_w"].shape[0]

    # feed-forward slab: [fc1|fc2|fc3] fused along the output dim, fused bias as row D
    w_ff = jnp.concatenate([p["fc1_w"].T, p["fc2_w"].T, p["fc3_w"].T], axis=1)  # [D, 3H]
    b_ff = jnp.concatenate([p["fc1_b"], p["fc2_b"], p["fc3_b"]])                # [3H]
    ff_slab = _section(w_ff, b_ff, _pad8(D + 1), 3 * H)

    # head slab: both heads fused (first layers concat along N, rest block-diagonal).
    # The time-mean 1/WINS is folded into the first layer's weights here.
    L = max(2 * H, 2 * A)
    w_h1 = jnp.concatenate(
        [_deinterleave(p["l11_w"], H), _deinterleave(p["l21_w"], H)], axis=1
    ) * (1.0 / WINS)                                                            # [4H, 2H]
    b_h1 = jnp.concatenate([p["l11_b"], p["l21_b"]])
    w_h2 = _block_diag(p["l12_w"].T, p["l22_w"].T)                              # [2H, 2H]
    b_h2 = jnp.concatenate([p["l12_b"], p["l22_b"]])
    w_o = _block_diag(p["mean_w"].T, p["lstd_w"].T)                             # [2H, 2A]
    b_o = jnp.concatenate([p["mean_b"], p["lstd_b"]])
    head_slab = jnp.concatenate([
        _section(w_h1, b_h1, _pad8(4 * H + 1), L),
        _section(w_h2, b_h2, _pad8(2 * H + 1), L),
        _section(w_o, b_o, _pad8(2 * H + 1), L),
    ], axis=0)

    lif_params = jnp.concatenate([p["lif_w"][0], p["lif_b"]]).astype(jnp.float32)  # [4]
    return lif_params, ff_slab, head_slab


def gaussian_policy_forward(state, p, block_b=None):
    """state: [B, 5, num_inputs] f32. Returns (mean, log_std), each [B, num_actions]."""
    B, T, D = state.shape
    A = p["mean_w"].shape[0]
    lif_params, ff_slab, head_slab = pack_params(p)

    # Batch tile: a single whole-batch block for small B, 8..256-row tiles otherwise.
    if block_b is None:
        block_b = B
        for cand in (256, 128, 64, 32, 16, 8):
            if B % cand == 0:
                block_b = cand
                break
    assert B % block_b == 0, "batch must be divisible by the batch tile"
    grid = (B // block_b,)

    out = pl.pallas_call(
        gaussian_policy_kernel,
        out_shape=jax.ShapeDtypeStruct((B, 2 * A), jnp.float32),
        grid=grid,
        in_specs=[
            pl.BlockSpec((block_b, T, D), lambda b: (b, 0, 0)),
            pl.BlockSpec(memory_space=pltpu.MemorySpace.SMEM),   # 4 lif_fc scalars
            pl.BlockSpec(ff_slab.shape, lambda b: (0, 0)),        # weights resident across grid
            pl.BlockSpec(head_slab.shape, lambda b: (0, 0)),
        ],
        out_specs=pl.BlockSpec((block_b, 2 * A), lambda b: (b, 0)),
        compiler_params=pltpu.CompilerParams(dimension_semantics=("parallel",)),
    )(state, lif_params, ff_slab, head_slab)
    return out[:, :A], out[:, A:]


# ------------------------- deterministic parameter init -------------------------
def _xavier(key, out_f, in_f):
    a = jnp.sqrt(6.0 / (in_f + out_f))
    return jax.random.uniform(key, (out_f, in_f), jnp.float32, -a, a)


def init_params(key, num_inputs, num_actions, hidden_dim):
    keys = jax.random.split(key, 10)
    H, D, A = hidden_dim, num_inputs, num_actions
    z = lambda n: jnp.zeros((n,), jnp.float32)
    return {
        "fc1_w": _xavier(keys[0], H, D), "fc1_b": z(H),
        "fc2_w": _xavier(keys[1], H, D), "fc2_b": z(H),
        "fc3_w": _xavier(keys[2], H, D), "fc3_b": z(H),
        "lif_w": _xavier(keys[3], 1, 3), "lif_b": z(1),
        "l11_w": _xavier(keys[4], H, 4 * H), "l11_b": z(H),
        "l12_w": _xavier(keys[5], H, H), "l12_b": z(H),
        "mean_w": _xavier(keys[6], A, H), "mean_b": z(A),
        "l21_w": _xavier(keys[7], H, 4 * H), "l21_b": z(H),
        "l22_w": _xavier(keys[8], H, H), "l22_b": z(H),
        "lstd_w": _xavier(keys[9], A, H), "lstd_b": z(A),
    }
    # TODO(synk): lif_hh_layer2 is constructed in the PyTorch __init__ but never used in
    # forward(), so its parameters are intentionally not instantiated here.


# ------------------------------ pure-JAX reference ------------------------------
def reference_forward(state, p):
    B = state.shape[0]
    H = p["fc1_w"].shape[0]
    seq = jnp.repeat(state, 3, axis=1)  # [B, 15, D]
    mem = jnp.zeros((B, H, 4), jnp.float32)
    spike = jnp.zeros((B, H, 4), jnp.float32)
    ssum = jnp.zeros((B, H, 4), jnp.float32)
    for t in range(WINS):
        xin = seq[:, t, :]
        inp = jnp.stack(
            [
                xin @ p["fc1_w"].T + p["fc1_b"],
                xin @ p["fc2_w"].T + p["fc2_b"],
                xin @ p["fc3_w"].T + p["fc3_b"],
                (mem[:, :, 0:3] @ p["lif_w"].T + p["lif_b"])[:, :, 0],
            ],
            axis=-1,
        )
        mem = mem * DECAY * (1.0 - spike) + inp
        spike = (mem > THRESH).astype(jnp.float32)
        ssum = ssum + spike
    x = (ssum / WINS).reshape(B, 4 * H)
    x1 = jnp.maximum(x @ p["l11_w"].T + p["l11_b"], 0.0)
    x1 = jnp.maximum(x1 @ p["l12_w"].T + p["l12_b"], 0.0)
    mean = x1 @ p["mean_w"].T + p["mean_b"]
    x2 = jnp.maximum(x @ p["l21_w"].T + p["l21_b"], 0.0)
    x2 = jnp.maximum(x2 @ p["l22_w"].T + p["l22_b"], 0.0)
    log_std = jnp.clip(x2 @ p["lstd_w"].T + p["lstd_b"], LOG_SIG_MIN, LOG_SIG_MAX)
    return mean, log_std


if __name__ == "__main__":
    B, T, num_inputs, hidden_dim, num_actions = 2, 5, 8, 32, 4
    key = jax.random.PRNGKey(0)
    k_state, k_params, k_state2 = jax.random.split(key, 3)
    state = jax.random.normal(k_state, (B, T, num_inputs), jnp.float32)
    params = init_params(k_params, num_inputs, num_actions, hidden_dim)

    # Small-batch path (single grid step, whole-batch tile).
    mean, log_std = gaussian_policy_forward(state, params)
    jax.block_until_ready((mean, log_std))
    mean_ref, log_std_ref = reference_forward(state, params)
    assert mean.shape == (B, num_actions) and log_std.shape == (B, num_actions)
    assert jnp.allclose(mean, mean_ref, atol=2e-3, rtol=2e-3)
    assert jnp.allclose(log_std, log_std_ref, atol=2e-3, rtol=2e-3)

    # Batch-tiled grid path (2 grid steps of 8 rows) to validate the parallel tiling.
    B2 = 16
    state2 = jax.random.normal(k_state2, (B2, T, num_inputs), jnp.float32)
    mean2, log_std2 = gaussian_policy_forward(state2, params, block_b=8)
    jax.block_until_ready((mean2, log_std2))
    mean2_ref, log_std2_ref = reference_forward(state2, params)
    assert jnp.allclose(mean2, mean2_ref, atol=2e-3, rtol=2e-3)
    assert jnp.allclose(log_std2, log_std2_ref, atol=2e-3, rtol=2e-3)

    print("KERNEL_OK")
</pallas_src>

<mosaic_0001>
module attributes {stable_mosaic.version = 11 : i64} {
  func.func @gaussian_policy_kernel(%arg0: i32, %arg1: memref<2x5x8xf32, #tpu.memory_space<vmem>>, %arg2: memref<4xf32, #tpu.memory_space<smem>>, %arg3: memref<16x96xf32, #tpu.memory_space<vmem>>, %arg4: memref<280x64xf32, #tpu.memory_space<vmem>>, %arg5: memref<2x8xf32, #tpu.memory_space<vmem>>) attributes {dimension_semantics = [#tpu.dimension_semantics<parallel>], iteration_bounds = array<i64: 1>, scalar_prefetch = 0 : i64, scratch_operands = 0 : i64, tpu.core_type = #tpu.core_type<tc>, window_params = [{transform_indices = @transform_0, window_bounds = array<i64: 2, 5, 8>}, {transform_indices = @transform_1, window_bounds = array<i64: 4>}, {pipeline_mode = #tpu.pipeline_mode<synchronous>, transform_indices = @transform_2, window_bounds = array<i64: 16, 96>}, {pipeline_mode = #tpu.pipeline_mode<synchronous>, transform_indices = @transform_3, window_bounds = array<i64: 280, 64>}, {transform_indices = @transform_4, window_bounds = array<i64: 2, 8>}]} {
    %c0 = arith.constant 0 : index
    %c0_0 = arith.constant 0 : index
    %c0_1 = arith.constant 0 : index
    %0 = vector.load %arg1[%c0, %c0_0, %c0_1] : memref<2x5x8xf32, #tpu.memory_space<vmem>>, vector<2x5x8xf32>
    %c0_2 = arith.constant 0 : index
    %c0_3 = arith.constant 0 : index
    %1 = vector.load %arg3[%c0_2, %c0_3] : memref<16x96xf32, #tpu.memory_space<vmem>>, vector<8x96xf32>
    %c8 = arith.constant 8 : index
    %c0_4 = arith.constant 0 : index
    %2 = vector.load %arg3[%c8, %c0_4] : memref<16x96xf32, #tpu.memory_space<vmem>>, vector<1x96xf32>
    %3 = vector.shape_cast %2 : vector<1x96xf32> to vector<1x96xf32>
    %4 = vector.broadcast %3 : vector<1x96xf32> to vector<2x96xf32>
    %c0_5 = arith.constant 0 : index
    %5 = memref.load %arg2[%c0_5] : memref<4xf32, #tpu.memory_space<smem>>
    %c1 = arith.constant 1 : index
    %6 = memref.load %arg2[%c1] : memref<4xf32, #tpu.memory_space<smem>>
    %c2 = arith.constant 2 : index
    %7 = memref.load %arg2[%c2] : memref<4xf32, #tpu.memory_space<smem>>
    %c3 = arith.constant 3 : index
    %8 = memref.load %arg2[%c3] : memref<4xf32, #tpu.memory_space<smem>>
    %cst = arith.constant 0.000000e+00 : f32
    %9 = vector.broadcast %cst : f32 to vector<2x96xf32>
    %cst_6 = arith.constant 0.000000e+00 : f32
    %10 = vector.broadcast %cst_6 : f32 to vector<2x32xf32>
    %false = arith.constant false
    %11 = vector.broadcast %false : i1 to vector<2x96xi1>
    %false_7 = arith.constant false
    %12 = vector.broadcast %false_7 : i1 to vector<2x32xi1>
    %cst_8 = arith.constant 0.000000e+00 : f32
    %13 = vector.broadcast %cst_8 : f32 to vector<2x96xf32>
    %cst_9 = arith.constant 0.000000e+00 : f32
    %14 = vector.broadcast %cst_9 : f32 to vector<2x32xf32>
    %15 = vector.extract_strided_slice %0 {offsets = [0, 0, 0], sizes = [2, 1, 8], strides = [1, 1, 1]} : vector<2x5x8xf32> to vector<2x1x8xf32>
    %16 = vector.shape_cast %15 : vector<2x1x8xf32> to vector<2x8xf32>
    %cst_10 = arith.constant dense<0.000000e+00> : vector<2x96xf32>
    %17 = tpu.matmul %16, %1, %cst_10 {dimension_numbers = #tpu.dot_dimension_numbers<[1], [0], [0], [1], [0, 0, 1, 1], [], []>} : vector<2x8xf32>, vector<8x96xf32>, vector<2x96xf32> -> vector<2x96xf32>
    %18 = arith.addf %17, %4 : vector<2x96xf32>
    %19 = vector.extract_strided_slice %9 {offsets = [0, 0], sizes = [2, 32], strides = [1, 1]} : vector<2x96xf32> to vector<2x32xf32>
    %20 = vector.broadcast %5 : f32 to vector<2x32xf32>
    %21 = arith.mulf %19, %20 : vector<2x32xf32>
    %22 = vector.extract_strided_slice %9 {offsets = [0, 32], sizes = [2, 32], strides = [1, 1]} : vector<2x96xf32> to vector<2x32xf32>
    %23 = vector.broadcast %6 : f32 to vector<2x32xf32>
    %24 = arith.mulf %22, %23 : vector<2x32xf32>
    %25 = arith.addf %21, %24 : vector<2x32xf32>
    %26 = vector.extract_strided_slice %9 {offsets = [0, 64], sizes = [2, 32], strides = [1, 1]} : vector<2x96xf32> to vector<2x32xf32>
    %27 = vector.broadcast %7 : f32 to vector<2x32xf32>
    %28 = arith.mulf %26, %27 : vector<2x32xf32>
    %29 = arith.addf %25, %28 : vector<2x32xf32>
    %30 = vector.broadcast %8 : f32 to vector<2x32xf32>
    %31 = arith.addf %29, %30 : vector<2x32xf32>
    %cst_11 = arith.constant 2.000000e-01 : f32
    %32 = vector.broadcast %cst_11 : f32 to vector<2x96xf32>
    %33 = arith.mulf %9, %32 : vector<2x96xf32>
    %cst_12 = arith.constant 0.000000e+00 : f32
    %34 = vector.broadcast %cst_12 : f32 to vector<2x96xf32>
    %35 = arith.select %11, %34, %33 : vector<2x96xi1>, vector<2x96xf32>
    %36 = arith.addf %18, %35 : vector<2x96xf32>
    %cst_13 = arith.constant 8.000000e-01 : f32
    %37 = vector.broadcast %cst_13 : f32 to vector<2x96xf32>
    %38 = arith.cmpf ogt, %36, %37 : vector<2x96xf32>
    %39 = arith.extui %38 : vector<2x96xi1> to vector<2x96xi32>
    %40 = arith.sitofp %39 : vector<2x96xi32> to vector<2x96xf32>
    %41 = arith.addf %13, %40 : vector<2x96xf32>
    %cst_14 = arith.constant 2.000000e-01 : f32
    %42 = vector.broadcast %cst_14 : f32 to vector<2x32xf32>
    %43 = arith.mulf %10, %42 : vector<2x32xf32>
    %cst_15 = arith.constant 0.000000e+00 : f32
    %44 = vector.broadcast %cst_15 : f32 to vector<2x32xf32>
    %45 = arith.select %12, %44, %43 : vector<2x32xi1>, vector<2x32xf32>
    %46 = arith.addf %31, %45 : vector<2x32xf32>
    %cst_16 = arith.constant 8.000000e-01 : f32
    %47 = vector.broadcast %cst_16 : f32 to vector<2x32xf32>
    %48 = arith.cmpf ogt, %46, %47 : vector<2x32xf32>
    %49 = arith.extui %48 : vector<2x32xi1> to vector<2x32xi32>
    %50 = arith.sitofp %49 : vector<2x32xi32> to vector<2x32xf32>
    %51 = arith.addf %14, %50 : vector<2x32xf32>
    %52 = vector.extract_strided_slice %36 {offsets = [0, 0], sizes = [2, 32], strides = [1, 1]} : vector<2x96xf32> to vector<2x32xf32>
    %53 = vector.broadcast %5 : f32 to vector<2x32xf32>
    %54 = arith.mulf %52, %53 : vector<2x32xf32>
    %55 = vector.extract_strided_slice %36 {offsets = [0, 32], sizes = [2, 32], strides = [1, 1]} : vector<2x96xf32> to vector<2x32xf32>
    %56 = vector.broadcast %6 : f32 to vector<2x32xf32>
    %57 = arith.mulf %55, %56 : vector<2x32xf32>
    %58 = arith.addf %54, %57 : vector<2x32xf32>
    %59 = vector.extract_strided_slice %36 {offsets = [0, 64], sizes = [2, 32], strides = [1, 1]} : vector<2x96xf32> to vector<2x32xf32>
    %60 = vector.broadcast %7 : f32 to vector<2x32xf32>
    %61 = arith.mulf %59, %60 : vector<2x32xf32>
    %62 = arith.addf %58, %61 : vector<2x32xf32>
    %63 = vector.broadcast %8 : f32 to vector<2x32xf32>
    %64 = arith.addf %62, %63 : vector<2x32xf32>
    %cst_17 = arith.constant 2.000000e-01 : f32
    %65 = vector.broadcast %cst_17 : f32 to vector<2x96xf32>
    %66 = arith.mulf %36, %65 : vector<2x96xf32>
    %cst_18 = arith.constant 0.000000e+00 : f32
    %67 = vector.broadcast %cst_18 : f32 to vector<2x96xf32>
    %68 = arith.select %38, %67, %66 : vector<2x96xi1>, vector<2x96xf32>
    %69 = arith.addf %18, %68 : vector<2x96xf32>
    %cst_19 = arith.constant 8.000000e-01 : f32
    %70 = vector.broadcast %cst_19 : f32 to vector<2x96xf32>
    %71 = arith.cmpf ogt, %69, %70 : vector<2x96xf32>
    %72 = arith.extui %71 : vector<2x96xi1> to vector<2x96xi32>
    %73 = arith.sitofp %72 : vector<2x96xi32> to vector<2x96xf32>
    %74 = arith.addf %41, %73 : vector<2x96xf32>
    %cst_20 = arith.constant 2.000000e-01 : f32
    %75 = vector.broadcast %cst_20 : f32 to vector<2x32xf32>
    %76 = arith.mulf %46, %75 : vector<2x32xf32>
    %cst_21 = arith.constant 0.000000e+00 : f32
    %77 = vector.broadcast %cst_21 : f32 to vector<2x32xf32>
    %78 = arith.select %48, %77, %76 : vector<2x32xi1>, vector<2x32xf32>
    %79 = arith.addf %64, %78 : vector<2x32xf32>
    %cst_22 = arith.constant 8.000000e-01 : f32
    %80 = vector.broadcast %cst_22 : f32 to vector<2x32xf32>
    %81 = arith.cmpf ogt, %79, %80 : vector<2x32xf32>
    %82 = arith.extui %81 : vector<2x32xi1> to vector<2x32xi32>
    %83 = arith.sitofp %82 : vector<2x32xi32> to vector<2x32xf32>
    %84 = arith.addf %51, %83 : vector<2x32xf32>
    %85 = vector.extract_strided_slice %69 {offsets = [0, 0], sizes = [2, 32], strides = [1, 1]} : vector<2x96xf32> to vector<2x32xf32>
    %86 = vector.broadcast %5 : f32 to vector<2x32xf32>
    %87 = arith.mulf %85, %86 : vector<2x32xf32>
    %88 = vector.extract_strided_slice %69 {offsets = [0, 32], sizes = [2, 32], strides = [1, 1]} : vector<2x96xf32> to vector<2x32xf32>
    %89 = vector.broadcast %6 : f32 to vector<2x32xf32>
    %90 = arith.mulf %88, %89 : vector<2x32xf32>
    %91 = arith.addf %87, %90 : vector<2x32xf32>
    %92 = vector.extract_strided_slice %69 {offsets = [0, 64], sizes = [2, 32], strides = [1, 1]} : vector<2x96xf32> to vector<2x32xf32>
    %93 = vector.broadcast %7 : f32 to vector<2x32xf32>
    %94 = arith.mulf %92, %93 : vector<2x32xf32>
    %95 = arith.addf %91, %94 : vector<2x32xf32>
    %96 = vector.broadcast %8 : f32 to vector<2x32xf32>
    %97 = arith.addf %95, %96 : vector<2x32xf32>
    %cst_23 = arith.constant 2.000000e-01 : f32
    %98 = vector.broadcast %cst_23 : f32 to vector<2x96xf32>
    %99 = arith.mulf %69, %98 : vector<2x96xf32>
    %cst_24 = arith.constant 0.000000e+00 : f32
    %100 = vector.broadcast %cst_24 : f32 to vector<2x96xf32>
    %101 = arith.select %71, %100, %99 : vector<2x96xi1>, vector<2x96xf32>
    %102 = arith.addf %18, %101 : vector<2x96xf32>
    %cst_25 = arith.constant 8.000000e-01 : f32
    %103 = vector.broadcast %cst_25 : f32 to vector<2x96xf32>
    %104 = arith.cmpf ogt, %102, %103 : vector<2x96xf32>
    %105 = arith.extui %104 : vector<2x96xi1> to vector<2x96xi32>
    %106 = arith.sitofp %105 : vector<2x96xi32> to vector<2x96xf32>
    %107 = arith.addf %74, %106 : vector<2x96xf32>
    %cst_26 = arith.constant 2.000000e-01 : f32
    %108 = vector.broadcast %cst_26 : f32 to vector<2x32xf32>
    %109 = arith.mulf %79, %108 : vector<2x32xf32>
    %cst_27 = arith.constant 0.000000e+00 : f32
    %110 = vector.broadcast %cst_27 : f32 to vector<2x32xf32>
    %111 = arith.select %81, %110, %109 : vector<2x32xi1>, vector<2x32xf32>
    %112 = arith.addf %97, %111 : vector<2x32xf32>
    %cst_28 = arith.constant 8.000000e-01 : f32
    %113 = vector.broadcast %cst_28 : f32 to vector<2x32xf32>
    %114 = arith.cmpf ogt, %112, %113 : vector<2x32xf32>
    %115 = arith.extui %114 : vector<2x32xi1> to vector<2x32xi32>
    %116 = arith.sitofp %115 : vector<2x32xi32> to vector<2x32xf32>
    %117 = arith.addf %84, %116 : vector<2x32xf32>
    %118 = vector.extract_strided_slice %0 {offsets = [0, 1, 0], sizes = [2, 1, 8], strides = [1, 1, 1]} : vector<2x5x8xf32> to vector<2x1x8xf32>
    %119 = vector.shape_cast %118 : vector<2x1x8xf32> to vector<2x8xf32>
    %cst_29 = arith.constant dense<0.000000e+00> : vector<2x96xf32>
    %120 = tpu.matmul %119, %1, %cst_29 {dimension_numbers = #tpu.dot_dimension_numbers<[1], [0], [0], [1], [0, 0, 1, 1], [], []>} : vector<2x8xf32>, vector<8x96xf32>, vector<2x96xf32> -> vector<2x96xf32>
    %121 = arith.addf %120, %4 : vector<2x96xf32>
    %122 = vector.extract_strided_slice %102 {offsets = [0, 0], sizes = [2, 32], strides = [1, 1]} : vector<2x96xf32> to vector<2x32xf32>
    %123 = vector.broadcast %5 : f32 to vector<2x32xf32>
    %124 = arith.mulf %122, %123 : vector<2x32xf32>
    %125 = vector.extract_strided_slice %102 {offsets = [0, 32], sizes = [2, 32], strides = [1, 1]} : vector<2x96xf32> to vector<2x32xf32>
    %126 = vector.broadcast %6 : f32 to vector<2x32xf32>
    %127 = arith.mulf %125, %126 : vector<2x32xf32>
    %128 = arith.addf %124, %127 : vector<2x32xf32>
    %129 = vector.extract_strided_slice %102 {offsets = [0, 64], sizes = [2, 32], strides = [1, 1]} : vector<2x96xf32> to vector<2x32xf32>
    %130 = vector.broadcast %7 : f32 to vector<2x32xf32>
    %131 = arith.mulf %129, %130 : vector<2x32xf32>
    %132 = arith.addf %128, %131 : vector<2x32xf32>
    %133 = vector.broadcast %8 : f32 to vector<2x32xf32>
    %134 = arith.addf %132, %133 : vector<2x32xf32>
    %cst_30 = arith.constant 2.000000e-01 : f32
    %135 = vector.broadcast %cst_30 : f32 to vector<2x96xf32>
    %136 = arith.mulf %102, %135 : vector<2x96xf32>
    %cst_31 = arith.constant 0.000000e+00 : f32
    %137 = vector.broadcast %cst_31 : f32 to vector<2x96xf32>
    %138 = arith.select %104, %137, %136 : vector<2x96xi1>, vector<2x96xf32>
    %139 = arith.addf %121, %138 : vector<2x96xf32>
    %cst_32 = arith.constant 8.000000e-01 : f32
    %140 = vector.broadcast %cst_32 : f32 to vector<2x96xf32>
    %141 = arith.cmpf ogt, %139, %140 : vector<2x96xf32>
    %142 = arith.extui %141 : vector<2x96xi1> to vector<2x96xi32>
    %143 = arith.sitofp %142 : vector<2x96xi32> to vector<2x96xf32>
    %144 = arith.addf %107, %143 : vector<2x96xf32>
    %cst_33 = arith.constant 2.000000e-01 : f32
    %145 = vector.broadcast %cst_33 : f32 to vector<2x32xf32>
    %146 = arith.mulf %112, %145 : vector<2x32xf32>
    %cst_34 = arith.constant 0.000000e+00 : f32
    %147 = vector.broadcast %cst_34 : f32 to vector<2x32xf32>
    %148 = arith.select %114, %147, %146 : vector<2x32xi1>, vector<2x32xf32>
    %149 = arith.addf %134, %148 : vector<2x32xf32>
    %cst_35 = arith.constant 8.000000e-01 : f32
    %150 = vector.broadcast %cst_35 : f32 to vector<2x32xf32>
    %151 = arith.cmpf ogt, %149, %150 : vector<2x32xf32>
    %152 = arith.extui %151 : vector<2x32xi1> to vector<2x32xi32>
    %153 = arith.sitofp %152 : vector<2x32xi32> to vector<2x32xf32>
    %154 = arith.addf %117, %153 : vector<2x32xf32>
    %155 = vector.extract_strided_slice %139 {offsets = [0, 0], sizes = [2, 32], strides = [1, 1]} : vector<2x96xf32> to vector<2x32xf32>
    %156 = vector.broadcast %5 : f32 to vector<2x32xf32>
    %157 = arith.mulf %155, %156 : vector<2x32xf32>
    %158 = vector.extract_strided_slice %139 {offsets = [0, 32], sizes = [2, 32], strides = [1, 1]} : vector<2x96xf32> to vector<2x32xf32>
    %159 = vector.broadcast %6 : f32 to vector<2x32xf32>
    %160 = arith.mulf %158, %159 : vector<2x32xf32>
    %161 = arith.addf %157, %160 : vector<2x32xf32>
    %162 = vector.extract_strided_slice %139 {offsets = [0, 64], sizes = [2, 32], strides = [1, 1]} : vector<2x96xf32> to vector<2x32xf32>
    %163 = vector.broadcast %7 : f32 to vector<2x32xf32>
    %164 = arith.mulf %162, %163 : vector<2x32xf32>
    %165 = arith.addf %161, %164 : vector<2x32xf32>
    %166 = vector.broadcast %8 : f32 to vector<2x32xf32>
    %167 = arith.addf %165, %166 : vector<2x32xf32>
    %cst_36 = arith.constant 2.000000e-01 : f32
    %168 = vector.broadcast %cst_36 : f32 to vector<2x96xf32>
    %169 = arith.mulf %139, %168 : vector<2x96xf32>
    %cst_37 = arith.constant 0.000000e+00 : f32
    %170 = vector.broadcast %cst_37 : f32 to vector<2x96xf32>
    %171 = arith.select %141, %170, %169 : vector<2x96xi1>, vector<2x96xf32>
    %172 = arith.addf %121, %171 : vector<2x96xf32>
    %cst_38 = arith.constant 8.000000e-01 : f32
    %173 = vector.broadcast %cst_38 : f32 to vector<2x96xf32>
    %174 = arith.cmpf ogt, %172, %173 : vector<2x96xf32>
    %175 = arith.extui %174 : vector<2x96xi1> to vector<2x96xi32>
    %176 = arith.sitofp %175 : vector<2x96xi32> to vector<2x96xf32>
    %177 = arith.addf %144, %176 : vector<2x96xf32>
    %cst_39 = arith.constant 2.000000e-01 : f32
    %178 = vector.broadcast %cst_39 : f32 to vector<2x32xf32>
    %179 = arith.mulf %149, %178 : vector<2x32xf32>
    %cst_40 = arith.constant 0.000000e+00 : f32
    %180 = vector.broadcast %cst_40 : f32 to vector<2x32xf32>
    %181 = arith.select %151, %180, %179 : vector<2x32xi1>, vector<2x32xf32>
    %182 = arith.addf %167, %181 : vector<2x32xf32>
    %cst_41 = arith.constant 8.000000e-01 : f32
    %183 = vector.broadcast %cst_41 : f32 to vector<2x32xf32>
    %184 = arith.cmpf ogt, %182, %183 : vector<2x32xf32>
    %185 = arith.extui %184 : vector<2x32xi1> to vector<2x32xi32>
    %186 = arith.sitofp %185 : vector<2x32xi32> to vector<2x32xf32>
    %187 = arith.addf %154, %186 : vector<2x32xf32>
    %188 = vector.extract_strided_slice %172 {offsets = [0, 0], sizes = [2, 32], strides = [1, 1]} : vector<2x96xf32> to vector<2x32xf32>
    %189 = vector.broadcast %5 : f32 to vector<2x32xf32>
    %190 = arith.mulf %188, %189 : vector<2x32xf32>
    %191 = vector.extract_strided_slice %172 {offsets = [0, 32], sizes = [2, 32], strides = [1, 1]} : vector<2x96xf32> to vector<2x32xf32>
    %192 = vector.broadcast %6 : f32 to vector<2x32xf32>
    %193 = arith.mulf %191, %192 : vector<2x32xf32>
    %194 = arith.addf %190, %193 : vector<2x32xf32>
    %195 = vector.extract_strided_slice %172 {offsets = [0, 64], sizes = [2, 32], strides = [1, 1]} : vector<2x96xf32> to vector<2x32xf32>
    %196 = vector.broadcast %7 : f32 to vector<2x32xf32>
    %197 = arith.mulf %195, %196 : vector<2x32xf32>
    %198 = arith.addf %194, %197 : vector<2x32xf32>
    %199 = vector.broadcast %8 : f32 to vector<2x32xf32>
    %200 = arith.addf %198, %199 : vector<2x32xf32>
    %cst_42 = arith.constant 2.000000e-01 : f32
    %201 = vector.broadcast %cst_42 : f32 to vector<2x96xf32>
    %202 = arith.mulf %172, %201 : vector<2x96xf32>
    %cst_43 = arith.constant 0.000000e+00 : f32
    %203 = vector.broadcast %cst_43 : f32 to vector<2x96xf32>
    %204 = arith.select %174, %203, %202 : vector<2x96xi1>, vector<2x96xf32>
    %205 = arith.addf %121, %204 : vector<2x96xf32>
    %cst_44 = arith.constant 8.000000e-01 : f32
    %206 = vector.broadcast %cst_44 : f32 to vector<2x96xf32>
    %207 = arith.cmpf ogt, %205, %206 : vector<2x96xf32>
    %208 = arith.extui %207 : vector<2x96xi1> to vector<2x96xi32>
    %209 = arith.sitofp %208 : vector<2x96xi32> to vector<2x96xf32>
    %210 = arith.addf %177, %209 : vector<2x96xf32>
    %cst_45 = arith.constant 2.000000e-01 : f32
    %211 = vector.broadcast %cst_45 : f32 to vector<2x32xf32>
    %212 = arith.mulf %182, %211 : vector<2x32xf32>
    %cst_46 = arith.constant 0.000000e+00 : f32
    %213 = vector.broadcast %cst_46 : f32 to vector<2x32xf32>
    %214 = arith.select %184, %213, %212 : vector<2x32xi1>, vector<2x32xf32>
    %215 = arith.addf %200, %214 : vector<2x32xf32>
    %cst_47 = arith.constant 8.000000e-01 : f32
    %216 = vector.broadcast %cst_47 : f32 to vector<2x32xf32>
    %217 = arith.cmpf ogt, %215, %216 : vector<2x32xf32>
    %218 = arith.extui %217 : vector<2x32xi1> to vector<2x32xi32>
    %219 = arith.sitofp %218 : vector<2x32xi32> to vector<2x32xf32>
    %220 = arith.addf %187, %219 : vector<2x32xf32>
    %221 = vector.extract_strided_slice %0 {offsets = [0, 2, 0], sizes = [2, 1, 8], strides = [1, 1, 1]} : vector<2x5x8xf32> to vector<2x1x8xf32>
    %222 = vector.shape_cast %221 : vector<2x1x8xf32> to vector<2x8xf32>
    %cst_48 = arith.constant dense<0.000000e+00> : vector<2x96xf32>
    %223 = tpu.matmul %222, %1, %cst_48 {dimension_numbers = #tpu.dot_dimension_numbers<[1], [0], [0], [1], [0, 0, 1, 1], [], []>} : vector<2x8xf32>, vector<8x96xf32>, vector<2x96xf32> -> vector<2x96xf32>
    %224 = arith.addf %223, %4 : vector<2x96xf32>
    %225 = vector.extract_strided_slice %205 {offsets = [0, 0], sizes = [2, 32], strides = [1, 1]} : vector<2x96xf32> to vector<2x32xf32>
    %226 = vector.broadcast %5 : f32 to vector<2x32xf32>
    %227 = arith.mulf %225, %226 : vector<2x32xf32>
    %228 = vector.extract_strided_slice %205 {offsets = [0, 32], sizes = [2, 32], strides = [1, 1]} : vector<2x96xf32> to vector<2x32xf32>
    %229 = vector.broadcast %6 : f32 to vector<2x32xf32>
    %230 = arith.mulf %228, %229 : vector<2x32xf32>
    %231 = arith.addf %227, %230 : vector<2x32xf32>
    %232 = vector.extract_strided_slice %205 {offsets = [0, 64], sizes = [2, 32], strides = [1, 1]} : vector<2x96xf32> to vector<2x32xf32>
    %233 = vector.broadcast %7 : f32 to vector<2x32xf32>
    %234 = arith.mulf %232, %233 : vector<2x32xf32>
    %235 = arith.addf %231, %234 : vector<2x32xf32>
    %236 = vector.broadcast %8 : f32 to vector<2x32xf32>
    %237 = arith.addf %235, %236 : vector<2x32xf32>
    %cst_49 = arith.constant 2.000000e-01 : f32
    %238 = vector.broadcast %cst_49 : f32 to vector<2x96xf32>
    %239 = arith.mulf %205, %238 : vector<2x96xf32>
    %cst_50 = arith.constant 0.000000e+00 : f32
    %240 = vector.broadcast %cst_50 : f32 to vector<2x96xf32>
    %241 = arith.select %207, %240, %239 : vector<2x96xi1>, vector<2x96xf32>
    %242 = arith.addf %224, %241 : vector<2x96xf32>
    %cst_51 = arith.constant 8.000000e-01 : f32
    %243 = vector.broadcast %cst_51 : f32 to vector<2x96xf32>
    %244 = arith.cmpf ogt, %242, %243 : vector<2x96xf32>
    %245 = arith.extui %244 : vector<2x96xi1> to vector<2x96xi32>
    %246 = arith.sitofp %245 : vector<2x96xi32> to vector<2x96xf32>
    %247 = arith.addf %210, %246 : vector<2x96xf32>
    %cst_52 = arith.constant 2.000000e-01 : f32
    %248 = vector.broadcast %cst_52 : f32 to vector<2x32xf32>
    %249 = arith.mulf %215, %248 : vector<2x32xf32>
    %cst_53 = arith.constant 0.000000e+00 : f32
    %250 = vector.broadcast %cst_53 : f32 to vector<2x32xf32>
    %251 = arith.select %217, %250, %249 : vector<2x32xi1>, vector<2x32xf32>
    %252 = arith.addf %237, %251 : vector<2x32xf32>
    %cst_54 = arith.constant 8.000000e-01 : f32
    %253 = vector.broadcast %cst_54 : f32 to vector<2x32xf32>
    %254 = arith.cmpf ogt, %252, %253 : vector<2x32xf32>
    %255 = arith.extui %254 : vector<2x32xi1> to vector<2x32xi32>
    %256 = arith.sitofp %255 : vector<2x32xi32> to vector<2x32xf32>
    %257 = arith.addf %220, %256 : vector<2x32xf32>
    %258 = vector.extract_strided_slice %242 {offsets = [0, 0], sizes = [2, 32], strides = [1, 1]} : vector<2x96xf32> to vector<2x32xf32>
    %259 = vector.broadcast %5 : f32 to vector<2x32xf32>
    %260 = arith.mulf %258, %259 : vector<2x32xf32>
    %261 = vector.extract_strided_slice %242 {offsets = [0, 32], sizes = [2, 32], strides = [1, 1]} : vector<2x96xf32> to vector<2x32xf32>
    %262 = vector.broadcast %6 : f32 to vector<2x32xf32>
    %263 = arith.mulf %261, %262 : vector<2x32xf32>
    %264 = arith.addf %260, %263 : vector<2x32xf32>
    %265 = vector.extract_strided_slice %242 {offsets = [0, 64], sizes = [2, 32], strides = [1, 1]} : vector<2x96xf32> to vector<2x32xf32>
    %266 = vector.broadcast %7 : f32 to vector<2x32xf32>
    %267 = arith.mulf %265, %266 : vector<2x32xf32>
    %268 = arith.addf %264, %267 : vector<2x32xf32>
    %269 = vector.broadcast %8 : f32 to vector<2x32xf32>
    %270 = arith.addf %268, %269 : vector<2x32xf32>
    %cst_55 = arith.constant 2.000000e-01 : f32
    %271 = vector.broadcast %cst_55 : f32 to vector<2x96xf32>
    %272 = arith.mulf %242, %271 : vector<2x96xf32>
    %cst_56 = arith.constant 0.000000e+00 : f32
    %273 = vector.broadcast %cst_56 : f32 to vector<2x96xf32>
    %274 = arith.select %244, %273, %272 : vector<2x96xi1>, vector<2x96xf32>
    %275 = arith.addf %224, %274 : vector<2x96xf32>
    %cst_57 = arith.constant 8.000000e-01 : f32
    %276 = vector.broadcast %cst_57 : f32 to vector<2x96xf32>
    %277 = arith.cmpf ogt, %275, %276 : vector<2x96xf32>
    %278 = arith.extui %277 : vector<2x96xi1> to vector<2x96xi32>
    %279 = arith.sitofp %278 : vector<2x96xi32> to vector<2x96xf32>
    %280 = arith.addf %247, %279 : vector<2x96xf32>
    %cst_58 = arith.constant 2.000000e-01 : f32
    %281 = vector.broadcast %cst_58 : f32 to vector<2x32xf32>
    %282 = arith.mulf %252, %281 : vector<2x32xf32>
    %cst_59 = arith.constant 0.000000e+00 : f32
    %283 = vector.broadcast %cst_59 : f32 to vector<2x32xf32>
    %284 = arith.select %254, %283, %282 : vector<2x32xi1>, vector<2x32xf32>
    %285 = arith.addf %270, %284 : vector<2x32xf32>
    %cst_60 = arith.constant 8.000000e-01 : f32
    %286 = vector.broadcast %cst_60 : f32 to vector<2x32xf32>
    %287 = arith.cmpf ogt, %285, %286 : vector<2x32xf32>
    %288 = arith.extui %287 : vector<2x32xi1> to vector<2x32xi32>
    %289 = arith.sitofp %288 : vector<2x32xi32> to vector<2x32xf32>
    %290 = arith.addf %257, %289 : vector<2x32xf32>
    %291 = vector.extract_strided_slice %275 {offsets = [0, 0], sizes = [2, 32], strides = [1, 1]} : vector<2x96xf32> to vector<2x32xf32>
    %292 = vector.broadcast %5 : f32 to vector<2x32xf32>
    %293 = arith.mulf %291, %292 : vector<2x32xf32>
    %294 = vector.extract_strided_slice %275 {offsets = [0, 32], sizes = [2, 32], strides = [1, 1]} : vector<2x96xf32> to vector<2x32xf32>
    %295 = vector.broadcast %6 : f32 to vector<2x32xf32>
    %296 = arith.mulf %294, %295 : vector<2x32xf32>
    %297 = arith.addf %293, %296 : vector<2x32xf32>
    %298 = vector.extract_strided_slice %275 {offsets = [0, 64], sizes = [2, 32], strides = [1, 1]} : vector<2x96xf32> to vector<2x32xf32>
    %299 = vector.broadcast %7 : f32 to vector<2x32xf32>
    %300 = arith.mulf %298, %299 : vector<2x32xf32>
    %301 = arith.addf %297, %300 : vector<2x32xf32>
    %302 = vector.broadcast %8 : f32 to vector<2x32xf32>
    %303 = arith.addf %301, %302 : vector<2x32xf32>
    %cst_61 = arith.constant 2.000000e-01 : f32
    %304 = vector.broadcast %cst_61 : f32 to vector<2x96xf32>
    %305 = arith.mulf %275, %304 : vector<2x96xf32>
    %cst_62 = arith.constant 0.000000e+00 : f32
    %306 = vector.broadcast %cst_62 : f32 to vector<2x96xf32>
    %307 = arith.select %277, %306, %305 : vector<2x96xi1>, vector<2x96xf32>
    %308 = arith.addf %224, %307 : vector<2x96xf32>
    %cst_63 = arith.constant 8.000000e-01 : f32
    %309 = vector.broadcast %cst_63 : f32 to vector<2x96xf32>
    %310 = arith.cmpf ogt, %308, %309 : vector<2x96xf32>
    %311 = arith.extui %310 : vector<2x96xi1> to vector<2x96xi32>
    %312 = arith.sitofp %311 : vector<2x96xi32> to vector<2x96xf32>
    %313 = arith.addf %280, %312 : vector<2x96xf32>
    %cst_64 = arith.constant 2.000000e-01 : f32
    %314 = vector.broadcast %cst_64 : f32 to vector<2x32xf32>
    %315 = arith.mulf %285, %314 : vector<2x32xf32>
    %cst_65 = arith.constant 0.000000e+00 : f32
    %316 = vector.broadcast %cst_65 : f32 to vector<2x32xf32>
    %317 = arith.select %287, %316, %315 : vector<2x32xi1>, vector<2x32xf32>
    %318 = arith.addf %303, %317 : vector<2x32xf32>
    %cst_66 = arith.constant 8.000000e-01 : f32
    %319 = vector.broadcast %cst_66 : f32 to vector<2x32xf32>
    %320 = arith.cmpf ogt, %318, %319 : vector<2x32xf32>
    %321 = arith.extui %320 : vector<2x32xi1> to vector<2x32xi32>
    %322 = arith.sitofp %321 : vector<2x32xi32> to vector<2x32xf32>
    %323 = arith.addf %290, %322 : vector<2x32xf32>
    %324 = vector.extract_strided_slice %0 {offsets = [0, 3, 0], sizes = [2, 1, 8], strides = [1, 1, 1]} : vector<2x5x8xf32> to vector<2x1x8xf32>
    %325 = vector.shape_cast %324 : vector<2x1x8xf32> to vector<2x8xf32>
    %cst_67 = arith.constant dense<0.000000e+00> : vector<2x96xf32>
    %326 = tpu.matmul %325, %1, %cst_67 {dimension_numbers = #tpu.dot_dimension_numbers<[1], [0], [0], [1], [0, 0, 1, 1], [], []>} : vector<2x8xf32>, vector<8x96xf32>, vector<2x96xf32> -> vector<2x96xf32>
    %327 = arith.addf %326, %4 : vector<2x96xf32>
    %328 = vector.extract_strided_slice %308 {offsets = [0, 0], sizes = [2, 32], strides = [1, 1]} : vector<2x96xf32> to vector<2x32xf32>
    %329 = vector.broadcast %5 : f32 to vector<2x32xf32>
    %330 = arith.mulf %328, %329 : vector<2x32xf32>
    %331 = vector.extract_strided_slice %308 {offsets = [0, 32], sizes = [2, 32], strides = [1, 1]} : vector<2x96xf32> to vector<2x32xf32>
    %332 = vector.broadcast %6 : f32 to vector<2x32xf32>
    %333 = arith.mulf %331, %332 : vector<2x32xf32>
    %334 = arith.addf %330, %333 : vector<2x32xf32>
    %335 = vector.extract_strided_slice %308 {offsets = [0, 64], sizes = [2, 32], strides = [1, 1]} : vector<2x96xf32> to vector<2x32xf32>
    %336 = vector.broadcast %7 : f32 to vector<2x32xf32>
    %337 = arith.mulf %335, %336 : vector<2x32xf32>
    %338 = arith.addf %334, %337 : vector<2x32xf32>
    %339 = vector.broadcast %8 : f32 to vector<2x32xf32>
    %340 = arith.addf %338, %339 : vector<2x32xf32>
    %cst_68 = arith.constant 2.000000e-01 : f32
    %341 = vector.broadcast %cst_68 : f32 to vector<2x96xf32>
    %342 = arith.mulf %308, %341 : vector<2x96xf32>
    %cst_69 = arith.constant 0.000000e+00 : f32
    %343 = vector.broadcast %cst_69 : f32 to vector<2x96xf32>
    %344 = arith.select %310, %343, %342 : vector<2x96xi1>, vector<2x96xf32>
    %345 = arith.addf %327, %344 : vector<2x96xf32>
    %cst_70 = arith.constant 8.000000e-01 : f32
    %346 = vector.broadcast %cst_70 : f32 to vector<2x96xf32>
    %347 = arith.cmpf ogt, %345, %346 : vector<2x96xf32>
    %348 = arith.extui %347 : vector<2x96xi1> to vector<2x96xi32>
    %349 = arith.sitofp %348 : vector<2x96xi32> to vector<2x96xf32>
    %350 = arith.addf %313, %349 : vector<2x96xf32>
    %cst_71 = arith.constant 2.000000e-01 : f32
    %351 = vector.broadcast %cst_71 : f32 to vector<2x32xf32>
    %352 = arith.mulf %318, %351 : vector<2x32xf32>
    %cst_72 = arith.constant 0.000000e+00 : f32
    %353 = vector.broadcast %cst_72 : f32 to vector<2x32xf32>
    %354 = arith.select %320, %353, %352 : vector<2x32xi1>, vector<2x32xf32>
    %355 = arith.addf %340, %354 : vector<2x32xf32>
    %cst_73 = arith.constant 8.000000e-01 : f32
    %356 = vector.broadcast %cst_73 : f32 to vector<2x32xf32>
    %357 = arith.cmpf ogt, %355, %356 : vector<2x32xf32>
    %358 = arith.extui %357 : vector<2x32xi1> to vector<2x32xi32>
    %359 = arith.sitofp %358 : vector<2x32xi32> to vector<2x32xf32>
    %360 = arith.addf %323, %359 : vector<2x32xf32>
    %361 = vector.extract_strided_slice %345 {offsets = [0, 0], sizes = [2, 32], strides = [1, 1]} : vector<2x96xf32> to vector<2x32xf32>
    %362 = vector.broadcast %5 : f32 to vector<2x32xf32>
    %363 = arith.mulf %361, %362 : vector<2x32xf32>
    %364 = vector.extract_strided_slice %345 {offsets = [0, 32], sizes = [2, 32], strides = [1, 1]} : vector<2x96xf32> to vector<2x32xf32>
    %365 = vector.broadcast %6 : f32 to vector<2x32xf32>
    %366 = arith.mulf %364, %365 : vector<2x32xf32>
    %367 = arith.addf %363, %366 : vector<2x32xf32>
    %368 = vector.extract_strided_slice %345 {offsets = [0, 64], sizes = [2, 32], strides = [1, 1]} : vector<2x96xf32> to vector<2x32xf32>
    %369 = vector.broadcast %7 : f32 to vector<2x32xf32>
    %370 = arith.mulf %368, %369 : vector<2x32xf32>
    %371 = arith.addf %367, %370 : vector<2x32xf32>
    %372 = vector.broadcast %8 : f32 to vector<2x32xf32>
    %373 = arith.addf %371, %372 : vector<2x32xf32>
    %cst_74 = arith.constant 2.000000e-01 : f32
    %374 = vector.broadcast %cst_74 : f32 to vector<2x96xf32>
    %375 = arith.mulf %345, %374 : vector<2x96xf32>
    %cst_75 = arith.constant 0.000000e+00 : f32
    %376 = vector.broadcast %cst_75 : f32 to vector<2x96xf32>
    %377 = arith.select %347, %376, %375 : vector<2x96xi1>, vector<2x96xf32>
    %378 = arith.addf %327, %377 : vector<2x96xf32>
    %cst_76 = arith.constant 8.000000e-01 : f32
    %379 = vector.broadcast %cst_76 : f32 to vector<2x96xf32>
    %380 = arith.cmpf ogt, %378, %379 : vector<2x96xf32>
    %381 = arith.extui %380 : vector<2x96xi1> to vector<2x96xi32>
    %382 = arith.sitofp %381 : vector<2x96xi32> to vector<2x96xf32>
    %383 = arith.addf %350, %382 : vector<2x96xf32>
    %cst_77 = arith.constant 2.000000e-01 : f32
    %384 = vector.broadcast %cst_77 : f32 to vector<2x32xf32>
    %385 = arith.mulf %355, %384 : vector<2x32xf32>
    %cst_78 = arith.constant 0.000000e+00 : f32
    %386 = vector.broadcast %cst_78 : f32 to vector<2x32xf32>
    %387 = arith.select %357, %386, %385 : vector<2x32xi1>, vector<2x32xf32>
    %388 = arith.addf %373, %387 : vector<2x32xf32>
    %cst_79 = arith.constant 8.000000e-01 : f32
    %389 = vector.broadcast %cst_79 : f32 to vector<2x32xf32>
    %390 = arith.cmpf ogt, %388, %389 : vector<2x32xf32>
    %391 = arith.extui %390 : vector<2x32xi1> to vector<2x32xi32>
    %392 = arith.sitofp %391 : vector<2x32xi32> to vector<2x32xf32>
    %393 = arith.addf %360, %392 : vector<2x32xf32>
    %394 = vector.extract_strided_slice %378 {offsets = [0, 0], sizes = [2, 32], strides = [1, 1]} : vector<2x96xf32> to vector<2x32xf32>
    %395 = vector.broadcast %5 : f32 to vector<2x32xf32>
    %396 = arith.mulf %394, %395 : vector<2x32xf32>
    %397 = vector.extract_strided_slice %378 {offsets = [0, 32], sizes = [2, 32], strides = [1, 1]} : vector<2x96xf32> to vector<2x32xf32>
    %398 = vector.broadcast %6 : f32 to vector<2x32xf32>
    %399 = arith.mulf %397, %398 : vector<2x32xf32>
    %400 = arith.addf %396, %399 : vector<2x32xf32>
    %401 = vector.extract_strided_slice %378 {offsets = [0, 64], sizes = [2, 32], strides = [1, 1]} : vector<2x96xf32> to vector<2x32xf32>
    %402 = vector.broadcast %7 : f32 to vector<2x32xf32>
    %403 = arith.mulf %401, %402 : vector<2x32xf32>
    %404 = arith.addf %400, %403 : vector<2x32xf32>
    %405 = vector.broadcast %8 : f32 to vector<2x32xf32>
    %406 = arith.addf %404, %405 : vector<2x32xf32>
    %cst_80 = arith.constant 2.000000e-01 : f32
    %407 = vector.broadcast %cst_80 : f32 to vector<2x96xf32>
    %408 = arith.mulf %378, %407 : vector<2x96xf32>
    %cst_81 = arith.constant 0.000000e+00 : f32
    %409 = vector.broadcast %cst_81 : f32 to vector<2x96xf32>
    %410 = arith.select %380, %409, %408 : vector<2x96xi1>, vector<2x96xf32>
    %411 = arith.addf %327, %410 : vector<2x96xf32>
    %cst_82 = arith.constant 8.000000e-01 : f32
    %412 = vector.broadcast %cst_82 : f32 to vector<2x96xf32>
    %413 = arith.cmpf ogt, %411, %412 : vector<2x96xf32>
    %414 = arith.extui %413 : vector<2x96xi1> to vector<2x96xi32>
    %415 = arith.sitofp %414 : vector<2x96xi32> to vector<2x96xf32>
    %416 = arith.addf %383, %415 : vector<2x96xf32>
    %cst_83 = arith.constant 2.000000e-01 : f32
    %417 = vector.broadcast %cst_83 : f32 to vector<2x32xf32>
    %418 = arith.mulf %388, %417 : vector<2x32xf32>
    %cst_84 = arith.constant 0.000000e+00 : f32
    %419 = vector.broadcast %cst_84 : f32 to vector<2x32xf32>
    %420 = arith.select %390, %419, %418 : vector<2x32xi1>, vector<2x32xf32>
    %421 = arith.addf %406, %420 : vector<2x32xf32>
    %cst_85 = arith.constant 8.000000e-01 : f32
    %422 = vector.broadcast %cst_85 : f32 to vector<2x32xf32>
    %423 = arith.cmpf ogt, %421, %422 : vector<2x32xf32>
    %424 = arith.extui %423 : vector<2x32xi1> to vector<2x32xi32>
    %425 = arith.sitofp %424 : vector<2x32xi32> to vector<2x32xf32>
    %426 = arith.addf %393, %425 : vector<2x32xf32>
    %427 = vector.extract_strided_slice %0 {offsets = [0, 4, 0], sizes = [2, 1, 8], strides = [1, 1, 1]} : vector<2x5x8xf32> to vector<2x1x8xf32>
    %428 = vector.shape_cast %427 : vector<2x1x8xf32> to vector<2x8xf32>
    %cst_86 = arith.constant dense<0.000000e+00> : vector<2x96xf32>
    %429 = tpu.matmul %428, %1, %cst_86 {dimension_numbers = #tpu.dot_dimension_numbers<[1], [0], [0], [1], [0, 0, 1, 1], [], []>} : vector<2x8xf32>, vector<8x96xf32>, vector<2x96xf32> -> vector<2x96xf32>
    %430 = arith.addf %429, %4 : vector<2x96xf32>
    %431 = vector.extract_strided_slice %411 {offsets = [0, 0], sizes = [2, 32], strides = [1, 1]} : vector<2x96xf32> to vector<2x32xf32>
    %432 = vector.broadcast %5 : f32 to vector<2x32xf32>
    %433 = arith.mulf %431, %432 : vector<2x32xf32>
    %434 = vector.extract_strided_slice %411 {offsets = [0, 32], sizes = [2, 32], strides = [1, 1]} : vector<2x96xf32> to vector<2x32xf32>
    %435 = vector.broadcast %6 : f32 to vector<2x32xf32>
    %436 = arith.mulf %434, %435 : vector<2x32xf32>
    %437 = arith.addf %433, %436 : vector<2x32xf32>
    %438 = vector.extract_strided_slice %411 {offsets = [0, 64], sizes = [2, 32], strides = [1, 1]} : vector<2x96xf32> to vector<2x32xf32>
    %439 = vector.broadcast %7 : f32 to vector<2x32xf32>
    %440 = arith.mulf %438, %439 : vector<2x32xf32>
    %441 = arith.addf %437, %440 : vector<2x32xf32>
    %442 = vector.broadcast %8 : f32 to vector<2x32xf32>
    %443 = arith.addf %441, %442 : vector<2x32xf32>
    %cst_87 = arith.constant 2.000000e-01 : f32
    %444 = vector.broadcast %cst_87 : f32 to vector<2x96xf32>
    %445 = arith.mulf %411, %444 : vector<2x96xf32>
    %cst_88 = arith.constant 0.000000e+00 : f32
    %446 = vector.broadcast %cst_88 : f32 to vector<2x96xf32>
    %447 = arith.select %413, %446, %445 : vector<2x96xi1>, vector<2x96xf32>
    %448 = arith.addf %430, %447 : vector<2x96xf32>
    %cst_89 = arith.constant 8.000000e-01 : f32
    %449 = vector.broadcast %cst_89 : f32 to vector<2x96xf32>
    %450 = arith.cmpf ogt, %448, %449 : vector<2x96xf32>
    %451 = arith.extui %450 : vector<2x96xi1> to vector<2x96xi32>
    %452 = arith.sitofp %451 : vector<2x96xi32> to vector<2x96xf32>
    %453 = arith.addf %416, %452 : vector<2x96xf32>
    %cst_90 = arith.constant 2.000000e-01 : f32
    %454 = vector.broadcast %cst_90 : f32 to vector<2x32xf32>
    %455 = arith.mulf %421, %454 : vector<2x32xf32>
    %cst_91 = arith.constant 0.000000e+00 : f32
    %456 = vector.broadcast %cst_91 : f32 to vector<2x32xf32>
    %457 = arith.select %423, %456, %455 : vector<2x32xi1>, vector<2x32xf32>
    %458 = arith.addf %443, %457 : vector<2x32xf32>
    %cst_92 = arith.constant 8.000000e-01 : f32
    %459 = vector.broadcast %cst_92 : f32 to vector<2x32xf32>
    %460 = arith.cmpf ogt, %458, %459 : vector<2x32xf32>
    %461 = arith.extui %460 : vector<2x32xi1> to vector<2x32xi32>
    %462 = arith.sitofp %461 : vector<2x32xi32> to vector<2x32xf32>
    %463 = arith.addf %426, %462 : vector<2x32xf32>
    %464 = vector.extract_strided_slice %448 {offsets = [0, 0], sizes = [2, 32], strides = [1, 1]} : vector<2x96xf32> to vector<2x32xf32>
    %465 = vector.broadcast %5 : f32 to vector<2x32xf32>
    %466 = arith.mulf %464, %465 : vector<2x32xf32>
    %467 = vector.extract_strided_slice %448 {offsets = [0, 32], sizes = [2, 32], strides = [1, 1]} : vector<2x96xf32> to vector<2x32xf32>
    %468 = vector.broadcast %6 : f32 to vector<2x32xf32>
    %469 = arith.mulf %467, %468 : vector<2x32xf32>
    %470 = arith.addf %466, %469 : vector<2x32xf32>
    %471 = vector.extract_strided_slice %448 {offsets = [0, 64], sizes = [2, 32], strides = [1, 1]} : vector<2x96xf32> to vector<2x32xf32>
    %472 = vector.broadcast %7 : f32 to vector<2x32xf32>
    %473 = arith.mulf %471, %472 : vector<2x32xf32>
    %474 = arith.addf %470, %473 : vector<2x32xf32>
    %475 = vector.broadcast %8 : f32 to vector<2x32xf32>
    %476 = arith.addf %474, %475 : vector<2x32xf32>
    %cst_93 = arith.constant 2.000000e-01 : f32
    %477 = vector.broadcast %cst_93 : f32 to vector<2x96xf32>
    %478 = arith.mulf %448, %477 : vector<2x96xf32>
    %cst_94 = arith.constant 0.000000e+00 : f32
    %479 = vector.broadcast %cst_94 : f32 to vector<2x96xf32>
    %480 = arith.select %450, %479, %478 : vector<2x96xi1>, vector<2x96xf32>
    %481 = arith.addf %430, %480 : vector<2x96xf32>
    %cst_95 = arith.constant 8.000000e-01 : f32
    %482 = vector.broadcast %cst_95 : f32 to vector<2x96xf32>
    %483 = arith.cmpf ogt, %481, %482 : vector<2x96xf32>
    %484 = arith.extui %483 : vector<2x96xi1> to vector<2x96xi32>
    %485 = arith.sitofp %484 : vector<2x96xi32> to vector<2x96xf32>
    %486 = arith.addf %453, %485 : vector<2x96xf32>
    %cst_96 = arith.constant 2.000000e-01 : f32
    %487 = vector.broadcast %cst_96 : f32 to vector<2x32xf32>
    %488 = arith.mulf %458, %487 : vector<2x32xf32>
    %cst_97 = arith.constant 0.000000e+00 : f32
    %489 = vector.broadcast %cst_97 : f32 to vector<2x32xf32>
    %490 = arith.select %460, %489, %488 : vector<2x32xi1>, vector<2x32xf32>
    %491 = arith.addf %476, %490 : vector<2x32xf32>
    %cst_98 = arith.constant 8.000000e-01 : f32
    %492 = vector.broadcast %cst_98 : f32 to vector<2x32xf32>
    %493 = arith.cmpf ogt, %491, %492 : vector<2x32xf32>
    %494 = arith.extui %493 : vector<2x32xi1> to vector<2x32xi32>
    %495 = arith.sitofp %494 : vector<2x32xi32> to vector<2x32xf32>
    %496 = arith.addf %463, %495 : vector<2x32xf32>
    %497 = vector.extract_strided_slice %481 {offsets = [0, 0], sizes = [2, 32], strides = [1, 1]} : vector<2x96xf32> to vector<2x32xf32>
    %498 = vector.broadcast %5 : f32 to vector<2x32xf32>
    %499 = arith.mulf %497, %498 : vector<2x32xf32>
    %500 = vector.extract_strided_slice %481 {offsets = [0, 32], sizes = [2, 32], strides = [1, 1]} : vector<2x96xf32> to vector<2x32xf32>
    %501 = vector.broadcast %6 : f32 to vector<2x32xf32>
    %502 = arith.mulf %500, %501 : vector<2x32xf32>
    %503 = arith.addf %499, %502 : vector<2x32xf32>
    %504 = vector.extract_strided_slice %481 {offsets = [0, 64], sizes = [2, 32], strides = [1, 1]} : vector<2x96xf32> to vector<2x32xf32>
    %505 = vector.broadcast %7 : f32 to vector<2x32xf32>
    %506 = arith.mulf %504, %505 : vector<2x32xf32>
    %507 = arith.addf %503, %506 : vector<2x32xf32>
    %508 = vector.broadcast %8 : f32 to vector<2x32xf32>
    %509 = arith.addf %507, %508 : vector<2x32xf32>
    %cst_99 = arith.constant 2.000000e-01 : f32
    %510 = vector.broadcast %cst_99 : f32 to vector<2x96xf32>
    %511 = arith.mulf %481, %510 : vector<2x96xf32>
    %cst_100 = arith.constant 0.000000e+00 : f32
    %512 = vector.broadcast %cst_100 : f32 to vector<2x96xf32>
    %513 = arith.select %483, %512, %511 : vector<2x96xi1>, vector<2x96xf32>
    %514 = arith.addf %430, %513 : vector<2x96xf32>
    %cst_101 = arith.constant 8.000000e-01 : f32
    %515 = vector.broadcast %cst_101 : f32 to vector<2x96xf32>
    %516 = arith.cmpf ogt, %514, %515 : vector<2x96xf32>
    %517 = arith.extui %516 : vector<2x96xi1> to vector<2x96xi32>
    %518 = arith.sitofp %517 : vector<2x96xi32> to vector<2x96xf32>
    %519 = arith.addf %486, %518 : vector<2x96xf32>
    %cst_102 = arith.constant 2.000000e-01 : f32
    %520 = vector.broadcast %cst_102 : f32 to vector<2x32xf32>
    %521 = arith.mulf %491, %520 : vector<2x32xf32>
    %cst_103 = arith.constant 0.000000e+00 : f32
    %522 = vector.broadcast %cst_103 : f32 to vector<2x32xf32>
    %523 = arith.select %493, %522, %521 : vector<2x32xi1>, vector<2x32xf32>
    %524 = arith.addf %509, %523 : vector<2x32xf32>
    %cst_104 = arith.constant 8.000000e-01 : f32
    %525 = vector.broadcast %cst_104 : f32 to vector<2x32xf32>
    %526 = arith.cmpf ogt, %524, %525 : vector<2x32xf32>
    %527 = arith.extui %526 : vector<2x32xi1> to vector<2x32xi32>
    %528 = arith.sitofp %527 : vector<2x32xi32> to vector<2x32xf32>
    %529 = arith.addf %496, %528 : vector<2x32xf32>
    %c0_105 = arith.constant 0 : index
    %c0_106 = arith.constant 0 : index
    %530 = vector.load %arg4[%c0_105, %c0_106] : memref<280x64xf32, #tpu.memory_space<vmem>>, vector<96x64xf32>
    %c96 = arith.constant 96 : index
    %c0_107 = arith.constant 0 : index
    %531 = vector.load %arg4[%c96, %c0_107] : memref<280x64xf32, #tpu.memory_space<vmem>>, vector<32x64xf32>
    %c128 = arith.constant 128 : index
    %c0_108 = arith.constant 0 : index
    %532 = vector.load %arg4[%c128, %c0_108] : memref<280x64xf32, #tpu.memory_space<vmem>>, vector<1x64xf32>
    %c136 = arith.constant 136 : index
    %c0_109 = arith.constant 0 : index
    %533 = vector.load %arg4[%c136, %c0_109] : memref<280x64xf32, #tpu.memory_space<vmem>>, vector<64x64xf32>
    %c200 = arith.constant 200 : index
    %c0_110 = arith.constant 0 : index
    %534 = vector.load %arg4[%c200, %c0_110] : memref<280x64xf32, #tpu.memory_space<vmem>>, vector<1x64xf32>
    %c208 = arith.constant 208 : index
    %c0_111 = arith.constant 0 : index
    %535 = vector.load %arg4[%c208, %c0_111] : memref<280x64xf32, #tpu.memory_space<vmem>>, vector<64x8xf32>
    %c272 = arith.constant 272 : index
    %c0_112 = arith.constant 0 : index
    %536 = vector.load %arg4[%c272, %c0_112] : memref<280x64xf32, #tpu.memory_space<vmem>>, vector<1x8xf32>
    %cst_113 = arith.constant dense<0.000000e+00> : vector<2x64xf32>
    %537 = tpu.matmul %519, %530, %cst_113 {dimension_numbers = #tpu.dot_dimension_numbers<[1], [0], [0], [1], [0, 0, 1, 1], [], []>} : vector<2x96xf32>, vector<96x64xf32>, vector<2x64xf32> -> vector<2x64xf32>
    %cst_114 = arith.constant dense<0.000000e+00> : vector<2x64xf32>
    %538 = tpu.matmul %529, %531, %cst_114 {dimension_numbers = #tpu.dot_dimension_numbers<[1], [0], [0], [1], [0, 0, 1, 1], [], []>} : vector<2x32xf32>, vector<32x64xf32>, vector<2x64xf32> -> vector<2x64xf32>
    %539 = arith.addf %537, %538 : vector<2x64xf32>
    %540 = vector.broadcast %532 : vector<1x64xf32> to vector<2x64xf32>
    %541 = arith.addf %539, %540 : vector<2x64xf32>
    %cst_115 = arith.constant 0.000000e+00 : f32
    %542 = vector.broadcast %cst_115 : f32 to vector<2x64xf32>
    %543 = arith.maximumf %541, %542 : vector<2x64xf32>
    %cst_116 = arith.constant dense<0.000000e+00> : vector<2x64xf32>
    %544 = tpu.matmul %543, %533, %cst_116 {dimension_numbers = #tpu.dot_dimension_numbers<[1], [0], [0], [1], [0, 0, 1, 1], [], []>} : vector<2x64xf32>, vector<64x64xf32>, vector<2x64xf32> -> vector<2x64xf32>
    %545 = vector.broadcast %534 : vector<1x64xf32> to vector<2x64xf32>
    %546 = arith.addf %544, %545 : vector<2x64xf32>
    %cst_117 = arith.constant 0.000000e+00 : f32
    %547 = vector.broadcast %cst_117 : f32 to vector<2x64xf32>
    %548 = arith.maximumf %546, %547 : vector<2x64xf32>
    %cst_118 = arith.constant dense<0.000000e+00> : vector<2x8xf32>
    %549 = tpu.matmul %548, %535, %cst_118 {dimension_numbers = #tpu.dot_dimension_numbers<[1], [0], [0], [1], [0, 0, 1, 1], [], []>} : vector<2x64xf32>, vector<64x8xf32>, vector<2x8xf32> -> vector<2x8xf32>
    %550 = vector.broadcast %536 : vector<1x8xf32> to vector<2x8xf32>
    %551 = arith.addf %549, %550 : vector<2x8xf32>
    %552 = tpu.iota {dimensions = array<i32: 1>} : vector<2x8xi32>
    %c4_i32 = arith.constant 4 : i32
    %553 = vector.broadcast %c4_i32 : i32 to vector<2x8xi32>
    %554 = arith.cmpi slt, %552, %553 : vector<2x8xi32>
    %cst_119 = arith.constant -2.000000e+01 : f32
    %cst_120 = arith.constant 2.000000e+00 : f32
    %555 = vector.broadcast %cst_119 : f32 to vector<2x8xf32>
    %556 = arith.maximumf %555, %551 : vector<2x8xf32>
    %557 = vector.broadcast %cst_120 : f32 to vector<2x8xf32>
    %558 = arith.minimumf %557, %556 : vector<2x8xf32>
    %559 = arith.select %554, %551, %558 : vector<2x8xi1>, vector<2x8xf32>
    %c0_121 = arith.constant 0 : index
    %c0_122 = arith.constant 0 : index
    %560 = vector.load %arg5[%c0_121, %c0_122] : memref<2x8xf32, #tpu.memory_space<vmem>>, vector<2x8xf32>
    tpu.vector_store %arg5[%c0_121, %c0_122], %559 {strides = array<i32>} : memref<2x8xf32, #tpu.memory_space<vmem>>, vector<2x8xf32>,
    return
  }
  func.func @transform_0(%arg0: i32) -> (i32, i32, i32) {
    %c0_i32 = arith.constant 0 : i32
    %c0_i32_0 = arith.constant 0 : i32
    %c0_i32_1 = arith.constant 0 : i32
    return %arg0, %c0_i32, %c0_i32_0 : i32, i32, i32
  }
  func.func @transform_1(%arg0: i32) -> i32 {
    %c0_i32 = arith.constant 0 : i32
    %c0_i32_0 = arith.constant 0 : i32
    return %c0_i32 : i32
  }
  func.func @transform_2(%arg0: i32) -> (i32, i32) {
    %c0_i32 = arith.constant 0 : i32
    %c0_i32_0 = arith.constant 0 : i32
    %c0_i32_1 = arith.constant 0 : i32
    return %c0_i32, %c0_i32_0 : i32, i32
  }
  func.func @transform_3(%arg0: i32) -> (i32, i32) {
    %c0_i32 = arith.constant 0 : i32
    %c0_i32_0 = arith.constant 0 : i32
    %c0_i32_1 = arith.constant 0 : i32
    return %c0_i32, %c0_i32_0 : i32, i32
  }
  func.func @transform_4(%arg0: i32) -> (i32, i32) {
    %c0_i32 = arith.constant 0 : i32
    %c0_i32_0 = arith.constant 0 : i32
    return %arg0, %c0_i32 : i32, i32
  }
}

</mosaic_0001>

<llo_original>
// kernel: tpu_custom_call.1
$region0: #{tpu_custom_call.1}
  #allocation0 [shape = 'u32[]', space=smem, size = 0x4, offset = 0x4, fixed_abs, tag = 'smem constant byte address 0x4 - core index']
  #allocation1 [shape = 'u32[144,128]{1,0:T(1,128)}', space=vmem, size = 0x12000, scoped, tag = 'internal scratch']
  %s0 = inlined_call_operand.vmem [shape: f32[2,5,8], index: 0, kind: input, shape index: {}]
  %s1 = inlined_call_operand.vmem [shape: f32[4], index: 1, kind: input, shape index: {}]
  %s2 = inlined_call_operand.vmem [shape: f32[16,96], index: 2, kind: input, shape index: {}]
  %s3 = inlined_call_operand.vmem [shape: f32[280,64], index: 3, kind: input, shape index: {}]
  %s4 = inlined_call_operand.hbm [shape: f32[2,8], index: 4, kind: output, shape index: {}]
  %s5 = sld [smem:[#allocation0]]
  $region30: #{tpu_custom_call.1} parent=0
    _
  %s7 = ssub.s32 1, %s5
  %s8 = scalar_select 0, %s7, %s5
  $region1: #{tpu_custom_call.1} parent=0
    #allocation2 [shape = 'u8[512]{0}', space=smem, size = 0x200, scoped, tag = 'input window, operand 1, single buffered']
    #allocation3 [shape = 's32[1]{0}', space=sflag, size = 0x4, scoped, tag = 'scoped memory for tpu_custom_call.1']
    #allocation4 [shape = 's32[1]{0}', space=sflag, size = 0x4, scoped, tag = 'scoped memory for tpu_custom_call.1']
    #allocation5 [shape = 'u8[1024]{0}', space=vmem, size = 0x400, scoped, tag = 'output window, operand 0, single buffered']
    %9 = vsyncpa [#allocation4], 0
    %10 = vsyncpa [#allocation3], 0
    // Predicated region
    $region2: #{tpu_custom_call.1} parent=1 // pred_check
      _
    $region3: #{tpu_custom_call.1} parent=1 // pred_check_branch
      %12 = sbr.rel (0) target = $region5
    $region4: #{tpu_custom_call.1} parent=1 // pred_region
      _
    $region5: #{tpu_custom_call.1} parent=1 // pred_fallthru
      _
    // Predicated region
    $region6: #{tpu_custom_call.1} parent=1 // pred_check
      _
    $region7: #{tpu_custom_call.1} parent=1 // pred_check_branch
      %14 = sbr.rel (0) target = $region9
    $region8: #{tpu_custom_call.1} parent=1 // pred_region
      %s16 = ssub.s32 16, 16
      %17 = vsyncadd [#allocation4], %s16
      %s19 = sshll.u32 %s1, 4
      %s20 = int_to_ptr.vmem [resolvable:$true] %s19
      %22 = dma.vmem_to_smem %s20, 16, [#allocation2], [#allocation4]
    $region9: #{tpu_custom_call.1} parent=1 // pred_fallthru
      _
    // Predicated region
    $region10: #{tpu_custom_call.1} parent=1 // pred_check
      _
    $region11: #{tpu_custom_call.1} parent=1 // pred_check_branch
      %24 = sbr.rel (0) target = $region13
    $region12: #{tpu_custom_call.1} parent=1 // pred_region
      _
    $region13: #{tpu_custom_call.1} parent=1 // pred_fallthru
      _
    // Predicated region
    $region14: #{tpu_custom_call.1} parent=1 // pred_check
      _
    $region15: #{tpu_custom_call.1} parent=1 // pred_check_branch
      %26 = sbr.rel (0) target = $region17
    $region16: #{tpu_custom_call.1} parent=1 // pred_region
      _
    $region17: #{tpu_custom_call.1} parent=1 // pred_fallthru
      _
    // Predicated region
    $region18: #{tpu_custom_call.1} parent=1 // pred_check
      _
    $region19: #{tpu_custom_call.1} parent=1 // pred_check_branch
      %28 = sbr.rel (0) target = $region21
    $region20: #{tpu_custom_call.1} parent=1 // pred_region
      %29 = dma.done [#allocation4], 16
    $region21: #{tpu_custom_call.1} parent=1 // pred_fallthru
      _
    %30 = sfence
    %v31 = vld [vmem:[%s0] sm:$0x1f]
    %v32 = vld [vmem:[%s0 + $0x8] sm:$0x1f]
    %v33 = vld [vmem:[%s2] sm:$0xff]
    %v34 = vld [vmem:[%s2 + $0x8] sm:$0x1]
    %v35 = vlaneseq
    %v36 = vshrl.u32 %v35, 7
    %v37 = vsub.s32 0, %v36
    %v38 = vrot.slane %v34, %v37
    %s39 = sld [smem:[#allocation2]]
    %s40 = sld [smem:[#allocation2 + $0x1]]
    %s41 = sld [smem:[#allocation2 + $0x2]]
    %s42 = sld [smem:[#allocation2 + $0x3]]
    %v45 = vrot.slane %v32, 7
    %vm46 = vcmask 1041409
    %v47 = vsel %vm46, %v45, %v31
    %vm48 = vcmask 64512
    %v49 = vsel %vm48, %v47, 0
    %51 = vmatprep.subr.mxu0 0.0
    %52 = vmatpush1.msra.mxu0 %v33
    %53 = vmatprep.subr.mxu0 0.0
    %54 = vmatpush1.msra.mxu0 0.0
    %55 = vmatprep.subr.mxu0 0.0
    %56 = vmatpush1.msra.mxu0 0.0
    %57 = vmatprep.subr.mxu0 0.0
    %58 = vmatpush1.msra.mxu0 0.0
    %59 = vmatprep.subr.mxu0 0.0
    %60 = vmatpush1.msra.mxu0 0.0
    %61 = vmatprep.subr.mxu0 0.0
    %62 = vmatpush1.msra.mxu0 0.0
    %63 = vmatprep.subr.mxu0 0.0
    %64 = vmatpush1.msra.mxu0 0.0
    %65 = vmatprep.subr.mxu0 0.0
    %66 = vmatpush1.msra.mxu0 0.0
    %67 = vmatprep.subr.mxu0 0.0
    %68 = vmatpush1.msra.mxu0 0.0
    %69 = vmatprep.subr.mxu0 0.0
    %70 = vmatpush1.msra.mxu0 0.0
    %71 = vmatprep.subr.mxu0 0.0
    %72 = vmatpush1.msra.mxu0 0.0
    %73 = vmatprep.subr.mxu0 0.0
    %74 = vmatpush1.msra.mxu0 0.0
    %75 = vmatprep.subr.mxu0 0.0
    %76 = vmatpush1.msra.mxu0 0.0
    %77 = vmatprep.subr.mxu0 0.0
    %78 = vmatpush1.msra.mxu0 0.0
    %79 = vmatprep.subr.mxu0 0.0
    %80 = vmatpush1.msra.mxu0 0.0
    %81 = vmatprep.subr.mxu0 0.0
    %82 = vmatpush1.msra.mxu0 0.0
    %83 = vmatprep.subr.mxu0 0.0
    %84 = vmatpush1.msra.mxu0 0.0
    %85 = vmatprep.subr.mxu0 0.0
    %86 = vmatpush1.msra.mxu0 0.0
    %87 = vmatprep.subr.mxu0 0.0
    %88 = vmatpush1.msra.mxu0 0.0
    %89 = vmatprep.subr.mxu0 0.0
    %90 = vmatpush1.msra.mxu0 0.0
    %91 = vmatprep.subr.mxu0 0.0
    %92 = vmatpush1.msra.mxu0 0.0
    %93 = vmatprep.subr.mxu0 0.0
    %94 = vmatpush1.msra.mxu0 0.0
    %95 = vmatprep.subr.mxu0 0.0
    %96 = vmatpush1.msra.mxu0 0.0
    %97 = vmatprep.subr.mxu0 0.0
    %98 = vmatpush1.msra.mxu0 0.0
    %99 = vmatprep.subr.mxu0 0.0
    %100 = vmatpush1.msra.mxu0 0.0
    %101 = vmatprep.subr.mxu0 0.0
    %102 = vmatpush1.msra.mxu0 0.0
    %103 = vmatprep.subr.mxu0 0.0
    %104 = vmatpush1.msra.mxu0 0.0
    %105 = vmatprep.subr.mxu0 0.0
    %106 = vmatpush1.msra.mxu0 0.0
    %107 = vmatprep.subr.mxu0 0.0
    %108 = vmatpush1.msra.mxu0 0.0
    %109 = vmatprep.subr.mxu0 0.0
    %110 = vmatpush1.msra.mxu0 0.0
    %111 = vmatprep.subr.mxu0 0.0
    %112 = vmatpush1.msra.mxu0 0.0
    %113 = vmatprep.subr.mxu0 0.0
    %114 = vmatpush1.msra.mxu0 0.0
    %115 = vmatprep.mubr.f32.mxu0 0.0
    %116 = vmatmul.mubr.f32.gmra.mrb[0].mxu0 %v49
    %v117 = vpop.f32.mrb[0].mxu0
    %v118 = vadd.f32 %v38, %v117
    %v119 = vpop.f32.mrb[0].mxu0
    %120 = vdwg.mxu0
    %v121 = vstv %s39
    %v122 = vmul.f32 %v121, 0.0
    %v123 = vstv %s40
    %v124 = vmul.f32 %v123, 0.0
    %v125 = vadd.f32 %v122, %v124
    %v126 = vstv %s41
    %v127 = vmul.f32 %v126, 0.0
    %v128 = vadd.f32 %v125, %v127
    %v129 = vstv %s42
    %v130 = vadd.f32 %v128, %v129
    %v131 = vadd.f32 %v118, 0.0
    %vm132 = vcmp.gt.f32.partialorder %v131, 0.8
    %v133 = vsel %vm132, 1, 0
    %v134 = vcvt.s32.f32 %v133
    %v135 = vadd.f32 %v134, 0.0
    %v136 = vadd.f32 %v130, 0.0
    %vm137 = vcmp.gt.f32.partialorder %v136, 0.8
    %v138 = vsel %vm137, 1, 0
    %v139 = vcvt.s32.f32 %v138
    %v140 = vadd.f32 %v139, 0.0
    %v141 = vmul.f32 %v131, %v121
    %v142 = vmul.f32 %v131, %v123
    %144 = vrot.lane.b32.xlu0 %v142, 96
    %v145 = vpop.permute.xlu0 %144
    %v147 = vadd.f32 %v141, %v145
    %v148 = vmul.f32 %v131, %v126
    %150 = vrot.lane.b32.xlu0 %v148, 64
    %v151 = vpop.permute.xlu0 %150
    %v153 = vadd.f32 %v147, %v151
    %v154 = vadd.f32 %v153, %v129
    %v155 = vmul.f32 %v131, 0.2
    %v156 = vsel %vm132, 0.0, %v155
    %v157 = vadd.f32 %v118, %v156
    %vm158 = vcmp.gt.f32.partialorder %v157, 0.8
    %v159 = vsel %vm158, 1, 0
    %v160 = vcvt.s32.f32 %v159
    %v161 = vadd.f32 %v135, %v160
    %v162 = vmul.f32 %v136, 0.2
    %v163 = vsel %vm137, 0.0, %v162
    %v164 = vadd.f32 %v154, %v163
    %vm165 = vcmp.gt.f32.partialorder %v164, 0.8
    %v166 = vsel %vm165, 1, 0
    %v167 = vcvt.s32.f32 %v166
    %v168 = vadd.f32 %v140, %v167
    %v169 = vmul.f32 %v157, %v121
    %v170 = vmul.f32 %v157, %v123
    %172 = vrot.lane.b32.xlu0 %v170, 96
    %v173 = vpop.permute.xlu0 %172
    %v175 = vadd.f32 %v169, %v173
    %v176 = vmul.f32 %v157, %v126
    %178 = vrot.lane.b32.xlu0 %v176, 64
    %v179 = vpop.permute.xlu0 %178
    %v181 = vadd.f32 %v175, %v179
    %v182 = vadd.f32 %v181, %v129
    %v183 = vmul.f32 %v157, 0.2
    %v184 = vsel %vm158, 0.0, %v183
    %v185 = vadd.f32 %v118, %v184
    %vm186 = vcmp.gt.f32.partialorder %v185, 0.8
    %v187 = vsel %vm186, 1, 0
    %v188 = vcvt.s32.f32 %v187
    %v189 = vadd.f32 %v161, %v188
    %v190 = vmul.f32 %v164, 0.2
    %v191 = vsel %vm165, 0.0, %v190
    %v192 = vadd.f32 %v182, %v191
    %vm193 = vcmp.gt.f32.partialorder %v192, 0.8
    %v194 = vsel %vm193, 1, 0
    %v195 = vcvt.s32.f32 %v194
    %v196 = vadd.f32 %v168, %v195
    %v197 = vrot.slane %v31, 1
    %v198 = vsel %vm46, %v32, %v197
    %v199 = vsel %vm48, %v198, 0
    %201 = vmatprep.subr.mxu0 0.0
    %202 = vmatpush1.msra.mxu0 %v33
    %203 = vmatprep.subr.mxu0 0.0
    %204 = vmatpush1.msra.mxu0 0.0
    %205 = vmatprep.subr.mxu0 0.0
    %206 = vmatpush1.msra.mxu0 0.0
    %207 = vmatprep.subr.mxu0 0.0
    %208 = vmatpush1.msra.mxu0 0.0
    %209 = vmatprep.subr.mxu0 0.0
    %210 = vmatpush1.msra.mxu0 0.0
    %211 = vmatprep.subr.mxu0 0.0
    %212 = vmatpush1.msra.mxu0 0.0
    %213 = vmatprep.subr.mxu0 0.0
    %214 = vmatpush1.msra.mxu0 0.0
    %215 = vmatprep.subr.mxu0 0.0
    %216 = vmatpush1.msra.mxu0 0.0
    %217 = vmatprep.subr.mxu0 0.0
    %218 = vmatpush1.msra.mxu0 0.0
    %219 = vmatprep.subr.mxu0 0.0
    %220 = vmatpush1.msra.mxu0 0.0
    %221 = vmatprep.subr.mxu0 0.0
    %222 = vmatpush1.msra.mxu0 0.0
    %223 = vmatprep.subr.mxu0 0.0
    %224 = vmatpush1.msra.mxu0 0.0
    %225 = vmatprep.subr.mxu0 0.0
    %226 = vmatpush1.msra.mxu0 0.0
    %227 = vmatprep.subr.mxu0 0.0
    %228 = vmatpush1.msra.mxu0 0.0
    %229 = vmatprep.subr.mxu0 0.0
    %230 = vmatpush1.msra.mxu0 0.0
    %231 = vmatprep.subr.mxu0 0.0
    %232 = vmatpush1.msra.mxu0 0.0
    %233 = vmatprep.subr.mxu0 0.0
    %234 = vmatpush1.msra.mxu0 0.0
    %235 = vmatprep.subr.mxu0 0.0
    %236 = vmatpush1.msra.mxu0 0.0
    %237 = vmatprep.subr.mxu0 0.0
    %238 = vmatpush1.msra.mxu0 0.0
    %239 = vmatprep.subr.mxu0 0.0
    %240 = vmatpush1.msra.mxu0 0.0
    %241 = vmatprep.subr.mxu0 0.0
    %242 = vmatpush1.msra.mxu0 0.0
    %243 = vmatprep.subr.mxu0 0.0
    %244 = vmatpush1.msra.mxu0 0.0
    %245 = vmatprep.subr.mxu0 0.0
    %246 = vmatpush1.msra.mxu0 0.0
    %247 = vmatprep.subr.mxu0 0.0
    %248 = vmatpush1.msra.mxu0 0.0
    %249 = vmatprep.subr.mxu0 0.0
    %250 = vmatpush1.msra.mxu0 0.0
    %251 = vmatprep.subr.mxu0 0.0
    %252 = vmatpush1.msra.mxu0 0.0
    %253 = vmatprep.subr.mxu0 0.0
    %254 = vmatpush1.msra.mxu0 0.0
    %255 = vmatprep.subr.mxu0 0.0
    %256 = vmatpush1.msra.mxu0 0.0
    %257 = vmatprep.subr.mxu0 0.0
    %258 = vmatpush1.msra.mxu0 0.0
    %259 = vmatprep.subr.mxu0 0.0
    %260 = vmatpush1.msra.mxu0 0.0
    %261 = vmatprep.subr.mxu0 0.0
    %262 = vmatpush1.msra.mxu0 0.0
    %263 = vmatprep.subr.mxu0 0.0
    %264 = vmatpush1.msra.mxu0 0.0
    %265 = vmatprep.mubr.f32.mxu0 0.0
    %266 = vmatmul.mubr.f32.gmra.mrb[0].mxu0 %v199
    %v267 = vpop.f32.mrb[0].mxu0
    %v268 = vadd.f32 %v38, %v267
    %v269 = vpop.f32.mrb[0].mxu0
    %270 = vdwg.mxu0
    %v271 = vmul.f32 %v185, %v121
    %v272 = vmul.f32 %v185, %v123
    %274 = vrot.lane.b32.xlu0 %v272, 96
    %v275 = vpop.permute.xlu0 %274
    %v277 = vadd.f32 %v271, %v275
    %v278 = vmul.f32 %v185, %v126
    %280 = vrot.lane.b32.xlu0 %v278, 64
    %v281 = vpop.permute.xlu0 %280
    %v283 = vadd.f32 %v277, %v281
    %v284 = vadd.f32 %v283, %v129
    %v285 = vmul.f32 %v185, 0.2
    %v286 = vsel %vm186, 0.0, %v285
    %v287 = vadd.f32 %v268, %v286
    %vm288 = vcmp.gt.f32.partialorder %v287, 0.8
    %v289 = vsel %vm288, 1, 0
    %v290 = vcvt.s32.f32 %v289
    %v291 = vadd.f32 %v189, %v290
    %v292 = vmul.f32 %v192, 0.2
    %v293 = vsel %vm193, 0.0, %v292
    %v294 = vadd.f32 %v284, %v293
    %vm295 = vcmp.gt.f32.partialorder %v294, 0.8
    %v296 = vsel %vm295, 1, 0
    %v297 = vcvt.s32.f32 %v296
    %v298 = vadd.f32 %v196, %v297
    %v299 = vmul.f32 %v287, %v121
    %v300 = vmul.f32 %v287, %v123
    %302 = vrot.lane.b32.xlu0 %v300, 96
    %v303 = vpop.permute.xlu0 %302
    %v305 = vadd.f32 %v299, %v303
    %v306 = vmul.f32 %v287, %v126
    %308 = vrot.lane.b32.xlu0 %v306, 64
    %v309 = vpop.permute.xlu0 %308
    %v311 = vadd.f32 %v305, %v309
    %v312 = vadd.f32 %v311, %v129
    %v313 = vmul.f32 %v287, 0.2
    %v314 = vsel %vm288, 0.0, %v313
    %v315 = vadd.f32 %v268, %v314
    %vm316 = vcmp.gt.f32.partialorder %v315, 0.8
    %v317 = vsel %vm316, 1, 0
    %v318 = vcvt.s32.f32 %v317
    %v319 = vadd.f32 %v291, %v318
    %v320 = vmul.f32 %v294, 0.2
    %v321 = vsel %vm295, 0.0, %v320
    %v322 = vadd.f32 %v312, %v321
    %vm323 = vcmp.gt.f32.partialorder %v322, 0.8
    %v324 = vsel %vm323, 1, 0
    %v325 = vcvt.s32.f32 %v324
    %v326 = vadd.f32 %v298, %v325
    %v327 = vmul.f32 %v315, %v121
    %v328 = vmul.f32 %v315, %v123
    %330 = vrot.lane.b32.xlu0 %v328, 96
    %v331 = vpop.permute.xlu0 %330
    %v333 = vadd.f32 %v327, %v331
    %v334 = vmul.f32 %v315, %v126
    %336 = vrot.lane.b32.xlu0 %v334, 64
    %v337 = vpop.permute.xlu0 %336
    %v339 = vadd.f32 %v333, %v337
    %v340 = vadd.f32 %v339, %v129
    %v341 = vmul.f32 %v315, 0.2
    %v342 = vsel %vm316, 0.0, %v341
    %v343 = vadd.f32 %v268, %v342
    %vm344 = vcmp.gt.f32.partialorder %v343, 0.8
    %v345 = vsel %vm344, 1, 0
    %v346 = vcvt.s32.f32 %v345
    %v347 = vadd.f32 %v319, %v346
    %v348 = vmul.f32 %v322, 0.2
    %v349 = vsel %vm323, 0.0, %v348
    %v350 = vadd.f32 %v340, %v349
    %vm351 = vcmp.gt.f32.partialorder %v350, 0.8
    %v352 = vsel %vm351, 1, 0
    %v353 = vcvt.s32.f32 %v352
    %v354 = vadd.f32 %v326, %v353
    %v355 = vrot.slane %v31, 2
    %v356 = vrot.slane %v32, 1
    %v357 = vsel %vm46, %v356, %v355
    %v358 = vsel %vm48, %v357, 0
    %360 = vmatprep.subr.mxu0 0.0
    %361 = vmatpush1.msra.mxu0 %v33
    %362 = vmatprep.subr.mxu0 0.0
    %363 = vmatpush1.msra.mxu0 0.0
    %364 = vmatprep.subr.mxu0 0.0
    %365 = vmatpush1.msra.mxu0 0.0
    %366 = vmatprep.subr.mxu0 0.0
    %367 = vmatpush1.msra.mxu0 0.0
    %368 = vmatprep.subr.mxu0 0.0
    %369 = vmatpush1.msra.mxu0 0.0
    %370 = vmatprep.subr.mxu0 0.0
    %371 = vmatpush1.msra.mxu0 0.0
    %372 = vmatprep.subr.mxu0 0.0
    %373 = vmatpush1.msra.mxu0 0.0
    %374 = vmatprep.subr.mxu0 0.0
    %375 = vmatpush1.msra.mxu0 0.0
    %376 = vmatprep.subr.mxu0 0.0
    %377 = vmatpush1.msra.mxu0 0.0
    %378 = vmatprep.subr.mxu0 0.0
    %379 = vmatpush1.msra.mxu0 0.0
    %380 = vmatprep.subr.mxu0 0.0
    %381 = vmatpush1.msra.mxu0 0.0
    %382 = vmatprep.subr.mxu0 0.0
    %383 = vmatpush1.msra.mxu0 0.0
    %384 = vmatprep.subr.mxu0 0.0
    %385 = vmatpush1.msra.mxu0 0.0
    %386 = vmatprep.subr.mxu0 0.0
    %387 = vmatpush1.msra.mxu0 0.0
    %388 = vmatprep.subr.mxu0 0.0
    %389 = vmatpush1.msra.mxu0 0.0
    %390 = vmatprep.subr.mxu0 0.0
    %391 = vmatpush1.msra.mxu0 0.0
    %392 = vmatprep.subr.mxu0 0.0
    %393 = vmatpush1.msra.mxu0 0.0
    %394 = vmatprep.subr.mxu0 0.0
    %395 = vmatpush1.msra.mxu0 0.0
    %396 = vmatprep.subr.mxu0 0.0
    %397 = vmatpush1.msra.mxu0 0.0
    %398 = vmatprep.subr.mxu0 0.0
    %399 = vmatpush1.msra.mxu0 0.0
    %400 = vmatprep.subr.mxu0 0.0
    %401 = vmatpush1.msra.mxu0 0.0
    %402 = vmatprep.subr.mxu0 0.0
    %403 = vmatpush1.msra.mxu0 0.0
    %404 = vmatprep.subr.mxu0 0.0
    %405 = vmatpush1.msra.mxu0 0.0
    %406 = vmatprep.subr.mxu0 0.0
    %407 = vmatpush1.msra.mxu0 0.0
    %408 = vmatprep.subr.mxu0 0.0
    %409 = vmatpush1.msra.mxu0 0.0
    %410 = vmatprep.subr.mxu0 0.0
    %411 = vmatpush1.msra.mxu0 0.0
    %412 = vmatprep.subr.mxu0 0.0
    %413 = vmatpush1.msra.mxu0 0.0
    %414 = vmatprep.subr.mxu0 0.0
    %415 = vmatpush1.msra.mxu0 0.0
    %416 = vmatprep.subr.mxu0 0.0
    %417 = vmatpush1.msra.mxu0 0.0
    %418 = vmatprep.subr.mxu0 0.0
    %419 = vmatpush1.msra.mxu0 0.0
    %420 = vmatprep.subr.mxu0 0.0
    %421 = vmatpush1.msra.mxu0 0.0
    %422 = vmatprep.subr.mxu0 0.0
    %423 = vmatpush1.msra.mxu0 0.0
    %424 = vmatprep.mubr.f32.mxu0 0.0
    %425 = vmatmul.mubr.f32.gmra.mrb[0].mxu0 %v358
    %v426 = vpop.f32.mrb[0].mxu0
    %v427 = vadd.f32 %v38, %v426
    %v428 = vpop.f32.mrb[0].mxu0
    %429 = vdwg.mxu0
    %v430 = vmul.f32 %v343, %v121
    %v431 = vmul.f32 %v343, %v123
    %433 = vrot.lane.b32.xlu0 %v431, 96
    %v434 = vpop.permute.xlu0 %433
    %v436 = vadd.f32 %v430, %v434
    %v437 = vmul.f32 %v343, %v126
    %439 = vrot.lane.b32.xlu0 %v437, 64
    %v440 = vpop.permute.xlu0 %439
    %v442 = vadd.f32 %v436, %v440
    %v443 = vadd.f32 %v442, %v129
    %v444 = vmul.f32 %v343, 0.2
    %v445 = vsel %vm344, 0.0, %v444
    %v446 = vadd.f32 %v427, %v445
    %vm447 = vcmp.gt.f32.partialorder %v446, 0.8
    %v448 = vsel %vm447, 1, 0
    %v449 = vcvt.s32.f32 %v448
    %v450 = vadd.f32 %v347, %v449
    %v451 = vmul.f32 %v350, 0.2
    %v452 = vsel %vm351, 0.0, %v451
    %v453 = vadd.f32 %v443, %v452
    %vm454 = vcmp.gt.f32.partialorder %v453, 0.8
    %v455 = vsel %vm454, 1, 0
    %v456 = vcvt.s32.f32 %v455
    %v457 = vadd.f32 %v354, %v456
    %v458 = vmul.f32 %v446, %v121
    %v459 = vmul.f32 %v446, %v123
    %461 = vrot.lane.b32.xlu0 %v459, 96
    %v462 = vpop.permute.xlu0 %461
    %v464 = vadd.f32 %v458, %v462
    %v465 = vmul.f32 %v446, %v126
    %467 = vrot.lane.b32.xlu0 %v465, 64
    %v468 = vpop.permute.xlu0 %467
    %v470 = vadd.f32 %v464, %v468
    %v471 = vadd.f32 %v470, %v129
    %v472 = vmul.f32 %v446, 0.2
    %v473 = vsel %vm447, 0.0, %v472
    %v474 = vadd.f32 %v427, %v473
    %vm475 = vcmp.gt.f32.partialorder %v474, 0.8
    %v476 = vsel %vm475, 1, 0
    %v477 = vcvt.s32.f32 %v476
    %v478 = vadd.f32 %v450, %v477
    %v479 = vmul.f32 %v453, 0.2
    %v480 = vsel %vm454, 0.0, %v479
    %v481 = vadd.f32 %v471, %v480
    %vm482 = vcmp.gt.f32.partialorder %v481, 0.8
    %v483 = vsel %vm482, 1, 0
    %v484 = vcvt.s32.f32 %v483
    %v485 = vadd.f32 %v457, %v484
    %v486 = vmul.f32 %v474, %v121
    %v487 = vmul.f32 %v474, %v123
    %489 = vrot.lane.b32.xlu0 %v487, 96
    %v490 = vpop.permute.xlu0 %489
    %v492 = vadd.f32 %v486, %v490
    %v493 = vmul.f32 %v474, %v126
    %495 = vrot.lane.b32.xlu0 %v493, 64
    %v496 = vpop.permute.xlu0 %495
    %v498 = vadd.f32 %v492, %v496
    %v499 = vadd.f32 %v498, %v129
    %v500 = vmul.f32 %v474, 0.2
    %v501 = vsel %vm475, 0.0, %v500
    %v502 = vadd.f32 %v427, %v501
    %vm503 = vcmp.gt.f32.partialorder %v502, 0.8
    %v504 = vsel %vm503, 1, 0
    %v505 = vcvt.s32.f32 %v504
    %v506 = vadd.f32 %v478, %v505
    %v507 = vmul.f32 %v481, 0.2
    %v508 = vsel %vm482, 0.0, %v507
    %v509 = vadd.f32 %v499, %v508
    %vm510 = vcmp.gt.f32.partialorder %v509, 0.8
    %v511 = vsel %vm510, 1, 0
    %v512 = vcvt.s32.f32 %v511
    %v513 = vadd.f32 %v485, %v512
    %v514 = vrot.slane %v31, 3
    %v515 = vrot.slane %v32, 2
    %v516 = vsel %vm46, %v515, %v514
    %v517 = vsel %vm48, %v516, 0
    %519 = vmatprep.subr.mxu0 0.0
    %520 = vmatpush1.msra.mxu0 %v33
    %521 = vmatprep.subr.mxu0 0.0
    %522 = vmatpush1.msra.mxu0 0.0
    %523 = vmatprep.subr.mxu0 0.0
    %524 = vmatpush1.msra.mxu0 0.0
    %525 = vmatprep.subr.mxu0 0.0
    %526 = vmatpush1.msra.mxu0 0.0
    %527 = vmatprep.subr.mxu0 0.0
    %528 = vmatpush1.msra.mxu0 0.0
    %529 = vmatprep.subr.mxu0 0.0
    %530 = vmatpush1.msra.mxu0 0.0
    %531 = vmatprep.subr.mxu0 0.0
    %532 = vmatpush1.msra.mxu0 0.0
    %533 = vmatprep.subr.mxu0 0.0
    %534 = vmatpush1.msra.mxu0 0.0
    %535 = vmatprep.subr.mxu0 0.0
    %536 = vmatpush1.msra.mxu0 0.0
    %537 = vmatprep.subr.mxu0 0.0
    %538 = vmatpush1.msra.mxu0 0.0
    %539 = vmatprep.subr.mxu0 0.0
    %540 = vmatpush1.msra.mxu0 0.0
    %541 = vmatprep.subr.mxu0 0.0
    %542 = vmatpush1.msra.mxu0 0.0
    %543 = vmatprep.subr.mxu0 0.0
    %544 = vmatpush1.msra.mxu0 0.0
    %545 = vmatprep.subr.mxu0 0.0
    %546 = vmatpush1.msra.mxu0 0.0
    %547 = vmatprep.subr.mxu0 0.0
    %548 = vmatpush1.msra.mxu0 0.0
    %549 = vmatprep.subr.mxu0 0.0
    %550 = vmatpush1.msra.mxu0 0.0
    %551 = vmatprep.subr.mxu0 0.0
    %552 = vmatpush1.msra.mxu0 0.0
    %553 = vmatprep.subr.mxu0 0.0
    %554 = vmatpush1.msra.mxu0 0.0
    %555 = vmatprep.subr.mxu0 0.0
    %556 = vmatpush1.msra.mxu0 0.0
    %557 = vmatprep.subr.mxu0 0.0
    %558 = vmatpush1.msra.mxu0 0.0
    %559 = vmatprep.subr.mxu0 0.0
    %560 = vmatpush1.msra.mxu0 0.0
    %561 = vmatprep.subr.mxu0 0.0
    %562 = vmatpush1.msra.mxu0 0.0
    %563 = vmatprep.subr.mxu0 0.0
    %564 = vmatpush1.msra.mxu0 0.0
    %565 = vmatprep.subr.mxu0 0.0
    %566 = vmatpush1.msra.mxu0 0.0
    %567 = vmatprep.subr.mxu0 0.0
    %568 = vmatpush1.msra.mxu0 0.0
    %569 = vmatprep.subr.mxu0 0.0
    %570 = vmatpush1.msra.mxu0 0.0
    %571 = vmatprep.subr.mxu0 0.0
    %572 = vmatpush1.msra.mxu0 0.0
    %573 = vmatprep.subr.mxu0 0.0
    %574 = vmatpush1.msra.mxu0 0.0
    %575 = vmatprep.subr.mxu0 0.0
    %576 = vmatpush1.msra.mxu0 0.0
    %577 = vmatprep.subr.mxu0 0.0
    %578 = vmatpush1.msra.mxu0 0.0
    %579 = vmatprep.subr.mxu0 0.0
    %580 = vmatpush1.msra.mxu0 0.0
    %581 = vmatprep.subr.mxu0 0.0
    %582 = vmatpush1.msra.mxu0 0.0
    %583 = vmatprep.mubr.f32.mxu0 0.0
    %584 = vmatmul.mubr.f32.gmra.mrb[0].mxu0 %v517
    %v585 = vpop.f32.mrb[0].mxu0
    %v586 = vadd.f32 %v38, %v585
    %v587 = vpop.f32.mrb[0].mxu0
    %588 = vdwg.mxu0
    %v589 = vmul.f32 %v502, %v121
    %v590 = vmul.f32 %v502, %v123
    %592 = vrot.lane.b32.xlu0 %v590, 96
    %v593 = vpop.permute.xlu0 %592
    %v595 = vadd.f32 %v589, %v593
    %v596 = vmul.f32 %v502, %v126
    %598 = vrot.lane.b32.xlu0 %v596, 64
    %v599 = vpop.permute.xlu0 %598
    %v601 = vadd.f32 %v595, %v599
    %v602 = vadd.f32 %v601, %v129
    %v603 = vmul.f32 %v502, 0.2
    %v604 = vsel %vm503, 0.0, %v603
    %v605 = vadd.f32 %v586, %v604
    %vm606 = vcmp.gt.f32.partialorder %v605, 0.8
    %v607 = vsel %vm606, 1, 0
    %v608 = vcvt.s32.f32 %v607
    %v609 = vadd.f32 %v506, %v608
    %v610 = vmul.f32 %v509, 0.2
    %v611 = vsel %vm510, 0.0, %v610
    %v612 = vadd.f32 %v602, %v611
    %vm613 = vcmp.gt.f32.partialorder %v612, 0.8
    %v614 = vsel %vm613, 1, 0
    %v615 = vcvt.s32.f32 %v614
    %v616 = vadd.f32 %v513, %v615
    %v617 = vmul.f32 %v605, %v121
    %v618 = vmul.f32 %v605, %v123
    %620 = vrot.lane.b32.xlu0 %v618, 96
    %v621 = vpop.permute.xlu0 %620
    %v623 = vadd.f32 %v617, %v621
    %v624 = vmul.f32 %v605, %v126
    %626 = vrot.lane.b32.xlu0 %v624, 64
    %v627 = vpop.permute.xlu0 %626
    %v629 = vadd.f32 %v623, %v627
    %v630 = vadd.f32 %v629, %v129
    %v631 = vmul.f32 %v605, 0.2
    %v632 = vsel %vm606, 0.0, %v631
    %v633 = vadd.f32 %v586, %v632
    %vm634 = vcmp.gt.f32.partialorder %v633, 0.8
    %v635 = vsel %vm634, 1, 0
    %v636 = vcvt.s32.f32 %v635
    %v637 = vadd.f32 %v609, %v636
    %v638 = vmul.f32 %v612, 0.2
    %v639 = vsel %vm613, 0.0, %v638
    %v640 = vadd.f32 %v630, %v639
    %vm641 = vcmp.gt.f32.partialorder %v640, 0.8
    %v642 = vsel %vm641, 1, 0
    %v643 = vcvt.s32.f32 %v642
    %v644 = vadd.f32 %v616, %v643
    %v645 = vmul.f32 %v633, %v121
    %v646 = vmul.f32 %v633, %v123
    %648 = vrot.lane.b32.xlu0 %v646, 96
    %v649 = vpop.permute.xlu0 %648
    %v651 = vadd.f32 %v645, %v649
    %v652 = vmul.f32 %v633, %v126
    %654 = vrot.lane.b32.xlu0 %v652, 64
    %v655 = vpop.permute.xlu0 %654
    %v657 = vadd.f32 %v651, %v655
    %v658 = vadd.f32 %v657, %v129
    %v659 = vmul.f32 %v633, 0.2
    %v660 = vsel %vm634, 0.0, %v659
    %v661 = vadd.f32 %v586, %v660
    %vm662 = vcmp.gt.f32.partialorder %v661, 0.8
    %v663 = vsel %vm662, 1, 0
    %v664 = vcvt.s32.f32 %v663
    %v665 = vadd.f32 %v637, %v664
    %v666 = vmul.f32 %v640, 0.2
    %v667 = vsel %vm641, 0.0, %v666
    %v668 = vadd.f32 %v658, %v667
    %vm669 = vcmp.gt.f32.partialorder %v668, 0.8
    %v670 = vsel %vm669, 1, 0
    %v671 = vcvt.s32.f32 %v670
    %v672 = vadd.f32 %v644, %v671
    %v673 = vrot.slane %v31, 4
    %v674 = vrot.slane %v32, 3
    %v675 = vsel %vm46, %v674, %v673
    %v676 = vsel %vm48, %v675, 0
    %678 = vmatprep.subr.mxu0 0.0
    %679 = vmatpush1.msra.mxu0 %v33
    %680 = vmatprep.subr.mxu0 0.0
    %681 = vmatpush1.msra.mxu0 0.0
    %682 = vmatprep.subr.mxu0 0.0
    %683 = vmatpush1.msra.mxu0 0.0
    %684 = vmatprep.subr.mxu0 0.0
    %685 = vmatpush1.msra.mxu0 0.0
    %686 = vmatprep.subr.mxu0 0.0
    %687 = vmatpush1.msra.mxu0 0.0
    %688 = vmatprep.subr.mxu0 0.0
    %689 = vmatpush1.msra.mxu0 0.0
    %690 = vmatprep.subr.mxu0 0.0
    %691 = vmatpush1.msra.mxu0 0.0
    %692 = vmatprep.subr.mxu0 0.0
    %693 = vmatpush1.msra.mxu0 0.0
    %694 = vmatprep.subr.mxu0 0.0
    %695 = vmatpush1.msra.mxu0 0.0
    %696 = vmatprep.subr.mxu0 0.0
    %697 = vmatpush1.msra.mxu0 0.0
    %698 = vmatprep.subr.mxu0 0.0
    %699 = vmatpush1.msra.mxu0 0.0
    %700 = vmatprep.subr.mxu0 0.0
    %701 = vmatpush1.msra.mxu0 0.0
    %702 = vmatprep.subr.mxu0 0.0
    %703 = vmatpush1.msra.mxu0 0.0
    %704 = vmatprep.subr.mxu0 0.0
    %705 = vmatpush1.msra.mxu0 0.0
    %706 = vmatprep.subr.mxu0 0.0
    %707 = vmatpush1.msra.mxu0 0.0
    %708 = vmatprep.subr.mxu0 0.0
    %709 = vmatpush1.msra.mxu0 0.0
    %710 = vmatprep.subr.mxu0 0.0
    %711 = vmatpush1.msra.mxu0 0.0
    %712 = vmatprep.subr.mxu0 0.0
    %713 = vmatpush1.msra.mxu0 0.0
    %714 = vmatprep.subr.mxu0 0.0
    %715 = vmatpush1.msra.mxu0 0.0
    %716 = vmatprep.subr.mxu0 0.0
    %717 = vmatpush1.msra.mxu0 0.0
    %718 = vmatprep.subr.mxu0 0.0
    %719 = vmatpush1.msra.mxu0 0.0
    %720 = vmatprep.subr.mxu0 0.0
    %721 = vmatpush1.msra.mxu0 0.0
    %722 = vmatprep.subr.mxu0 0.0
    %723 = vmatpush1.msra.mxu0 0.0
    %724 = vmatprep.subr.mxu0 0.0
    %725 = vmatpush1.msra.mxu0 0.0
    %726 = vmatprep.subr.mxu0 0.0
    %727 = vmatpush1.msra.mxu0 0.0
    %728 = vmatprep.subr.mxu0 0.0
    %729 = vmatpush1.msra.mxu0 0.0
    %730 = vmatprep.subr.mxu0 0.0
    %731 = vmatpush1.msra.mxu0 0.0
    %732 = vmatprep.subr.mxu0 0.0
    %733 = vmatpush1.msra.mxu0 0.0
    %734 = vmatprep.subr.mxu0 0.0
    %735 = vmatpush1.msra.mxu0 0.0
    %736 = vmatprep.subr.mxu0 0.0
    %737 = vmatpush1.msra.mxu0 0.0
    %738 = vmatprep.subr.mxu0 0.0
    %739 = vmatpush1.msra.mxu0 0.0
    %740 = vmatprep.subr.mxu0 0.0
    %741 = vmatpush1.msra.mxu0 0.0
    %742 = vmatprep.mubr.f32.mxu0 0.0
    %743 = vmatmul.mubr.f32.gmra.mrb[0].mxu0 %v676
    %v744 = vpop.f32.mrb[0].mxu0
    %v745 = vadd.f32 %v38, %v744
    %v746 = vpop.f32.mrb[0].mxu0
    %747 = vdwg.mxu0
    %v748 = vmul.f32 %v661, %v121
    %v749 = vmul.f32 %v661, %v123
    %751 = vrot.lane.b32.xlu0 %v749, 96
    %v752 = vpop.permute.xlu0 %751
    %v754 = vadd.f32 %v748, %v752
    %v755 = vmul.f32 %v661, %v126
    %757 = vrot.lane.b32.xlu0 %v755, 64
    %v758 = vpop.permute.xlu0 %757
    %v760 = vadd.f32 %v754, %v758
    %v761 = vadd.f32 %v760, %v129
    %v762 = vmul.f32 %v661, 0.2
    %v763 = vsel %vm662, 0.0, %v762
    %v764 = vadd.f32 %v745, %v763
    %vm765 = vcmp.gt.f32.partialorder %v764, 0.8
    %v766 = vsel %vm765, 1, 0
    %v767 = vcvt.s32.f32 %v766
    %v768 = vadd.f32 %v665, %v767
    %v769 = vmul.f32 %v668, 0.2
    %v770 = vsel %vm669, 0.0, %v769
    %v771 = vadd.f32 %v761, %v770
    %vm772 = vcmp.gt.f32.partialorder %v771, 0.8
    %v773 = vsel %vm772, 1, 0
    %v774 = vcvt.s32.f32 %v773
    %v775 = vadd.f32 %v672, %v774
    %v776 = vmul.f32 %v764, %v121
    %v777 = vmul.f32 %v764, %v123
    %779 = vrot.lane.b32.xlu0 %v777, 96
    %v780 = vpop.permute.xlu0 %779
    %v782 = vadd.f32 %v776, %v780
    %v783 = vmul.f32 %v764, %v126
    %785 = vrot.lane.b32.xlu0 %v783, 64
    %v786 = vpop.permute.xlu0 %785
    %v788 = vadd.f32 %v782, %v786
    %v789 = vadd.f32 %v788, %v129
    %v790 = vmul.f32 %v764, 0.2
    %v791 = vsel %vm765, 0.0, %v790
    %v792 = vadd.f32 %v745, %v791
    %vm793 = vcmp.gt.f32.partialorder %v792, 0.8
    %v794 = vsel %vm793, 1, 0
    %v795 = vcvt.s32.f32 %v794
    %v796 = vadd.f32 %v768, %v795
    %v797 = vmul.f32 %v771, 0.2
    %v798 = vsel %vm772, 0.0, %v797
    %v799 = vadd.f32 %v789, %v798
    %vm800 = vcmp.gt.f32.partialorder %v799, 0.8
    %v801 = vsel %vm800, 1, 0
    %v802 = vcvt.s32.f32 %v801
    %v803 = vadd.f32 %v775, %v802
    %v804 = vmul.f32 %v792, %v121
    %v805 = vmul.f32 %v792, %v123
    %807 = vrot.lane.b32.xlu0 %v805, 96
    %v808 = vpop.permute.xlu0 %807
    %v810 = vadd.f32 %v804, %v808
    %v811 = vmul.f32 %v792, %v126
    %813 = vrot.lane.b32.xlu0 %v811, 64
    %v814 = vpop.permute.xlu0 %813
    %v816 = vadd.f32 %v810, %v814
    %v817 = vadd.f32 %v816, %v129
    %v818 = vmul.f32 %v792, 0.2
    %v819 = vsel %vm793, 0.0, %v818
    %v820 = vadd.f32 %v745, %v819
    %vm821 = vcmp.gt.f32.partialorder %v820, 0.8
    %v822 = vsel %vm821, 1, 0
    %v823 = vcvt.s32.f32 %v822
    %v824 = vadd.f32 %v796, %v823
    %v825 = vmul.f32 %v799, 0.2
    %v826 = vsel %vm800, 0.0, %v825
    %v827 = vadd.f32 %v817, %v826
    %vm828 = vcmp.gt.f32.partialorder %v827, 0.8
    %v829 = vsel %vm828, 1, 0
    %v830 = vcvt.s32.f32 %v829
    %v831 = vadd.f32 %v803, %v830
    %v832 = vld [vmem:[%s3] sm:$0xff]
    %v833 = vld [vmem:[%s3 + $0x8] sm:$0xff]
    %v834 = vld [vmem:[%s3 + $0x10] sm:$0xff]
    %v835 = vld [vmem:[%s3 + $0x18] sm:$0xff]
    %v836 = vld [vmem:[%s3 + $0x20] sm:$0xff]
    %v837 = vld [vmem:[%s3 + $0x28] sm:$0xff]
    %v838 = vld [vmem:[%s3 + $0x30] sm:$0xff]
    %v839 = vld [vmem:[%s3 + $0x38] sm:$0xff]
    %v840 = vld [vmem:[%s3 + $0x40] sm:$0xff]
    %v841 = vld [vmem:[%s3 + $0x48] sm:$0xff]
    %v842 = vld [vmem:[%s3 + $0x50] sm:$0xff]
    %v843 = vld [vmem:[%s3 + $0x58] sm:$0xff]
    %v844 = vld [vmem:[%s3 + $0x60] sm:$0xff]
    %v845 = vld [vmem:[%s3 + $0x68] sm:$0xff]
    %v846 = vld [vmem:[%s3 + $0x70] sm:$0xff]
    %v847 = vld [vmem:[%s3 + $0x78] sm:$0xff]
    %v848 = vld [vmem:[%s3 + $0x80] sm:$0x1]
    %v849 = vld [vmem:[%s3 + $0x88] sm:$0xff]
    %v850 = vld [vmem:[%s3 + $0x90] sm:$0xff]
    %v851 = vld [vmem:[%s3 + $0x98] sm:$0xff]
    %v852 = vld [vmem:[%s3 + $0xa0] sm:$0xff]
    %v853 = vld [vmem:[%s3 + $0xa8] sm:$0xff]
    %v854 = vld [vmem:[%s3 + $0xb0] sm:$0xff]
    %v855 = vld [vmem:[%s3 + $0xb8] sm:$0xff]
    %v856 = vld [vmem:[%s3 + $0xc0] sm:$0xff]
    %v857 = vld [vmem:[%s3 + $0xc8] sm:$0x1]
    %v858 = vld [vmem:[%s3 + $0xd0] sm:$0xff]
    %v859 = vld [vmem:[%s3 + $0xd8] sm:$0xff]
    %v860 = vld [vmem:[%s3 + $0xe0] sm:$0xff]
    %v861 = vld [vmem:[%s3 + $0xe8] sm:$0xff]
    %v862 = vld [vmem:[%s3 + $0xf0] sm:$0xff]
    %v863 = vld [vmem:[%s3 + $0xf8] sm:$0xff]
    %v864 = vld [vmem:[%s3 + $0x100] sm:$0xff]
    %v865 = vld [vmem:[%s3 + $0x108] sm:$0xff]
    %v866 = vld [vmem:[%s3 + $0x110] sm:$0x1]
    %vm867 = vcmask 261120
    %v869 = vsel %vm867, %v831, 0
    %871 = vmatprep.subr.mxu0 0.0
    %872 = vmatpush1.msra.mxu0 %v844
    %873 = vmatprep.subr.mxu0 0.0
    %874 = vmatpush1.msra.mxu0 %v845
    %875 = vmatprep.subr.mxu0 0.0
    %876 = vmatpush1.msra.mxu0 %v846
    %877 = vmatprep.subr.mxu0 0.0
    %878 = vmatpush1.msra.mxu0 %v847
    %879 = vmatprep.subr.mxu0 0.0
    %880 = vmatpush1.msra.mxu0 0.0
    %881 = vmatprep.subr.mxu0 0.0
    %882 = vmatpush1.msra.mxu0 0.0
    %883 = vmatprep.subr.mxu0 0.0
    %884 = vmatpush1.msra.mxu0 0.0
    %885 = vmatprep.subr.mxu0 0.0
    %886 = vmatpush1.msra.mxu0 0.0
    %887 = vmatprep.subr.mxu0 0.0
    %888 = vmatpush1.msra.mxu0 0.0
    %889 = vmatprep.subr.mxu0 0.0
    %890 = vmatpush1.msra.mxu0 0.0
    %891 = vmatprep.subr.mxu0 0.0
    %892 = vmatpush1.msra.mxu0 0.0
    %893 = vmatprep.subr.mxu0 0.0
    %894 = vmatpush1.msra.mxu0 0.0
    %895 = vmatprep.subr.mxu0 0.0
    %896 = vmatpush1.msra.mxu0 0.0
    %897 = vmatprep.subr.mxu0 0.0
    %898 = vmatpush1.msra.mxu0 0.0
    %899 = vmatprep.subr.mxu0 0.0
    %900 = vmatpush1.msra.mxu0 0.0
    %901 = vmatprep.subr.mxu0 0.0
    %902 = vmatpush1.msra.mxu0 0.0
    %903 = vmatprep.subr.mxu0 0.0
    %904 = vmatpush1.msra.mxu0 0.0
    %905 = vmatprep.subr.mxu0 0.0
    %906 = vmatpush1.msra.mxu0 0.0
    %907 = vmatprep.subr.mxu0 0.0
    %908 = vmatpush1.msra.mxu0 0.0
    %909 = vmatprep.subr.mxu0 0.0
    %910 = vmatpush1.msra.mxu0 0.0
    %911 = vmatprep.subr.mxu0 0.0
    %912 = vmatpush1.msra.mxu0 0.0
    %913 = vmatprep.subr.mxu0 0.0
    %914 = vmatpush1.msra.mxu0 0.0
    %915 = vmatprep.subr.mxu0 0.0
    %916 = vmatpush1.msra.mxu0 0.0
    %917 = vmatprep.subr.mxu0 0.0
    %918 = vmatpush1.msra.mxu0 0.0
    %919 = vmatprep.subr.mxu0 0.0
    %920 = vmatpush1.msra.mxu0 0.0
    %921 = vmatprep.subr.mxu0 0.0
    %922 = vmatpush1.msra.mxu0 0.0
    %923 = vmatprep.subr.mxu0 0.0
    %924 = vmatpush1.msra.mxu0 0.0
    %925 = vmatprep.subr.mxu0 0.0
    %926 = vmatpush1.msra.mxu0 0.0
    %927 = vmatprep.subr.mxu0 0.0
    %928 = vmatpush1.msra.mxu0 0.0
    %929 = vmatprep.subr.mxu0 0.0
    %930 = vmatpush1.msra.mxu0 0.0
    %931 = vmatprep.subr.mxu0 0.0
    %932 = vmatpush1.msra.mxu0 0.0
    %933 = vmatprep.subr.mxu0 0.0
    %934 = vmatpush1.msra.mxu0 0.0
    %935 = vmatprep.mubr.f32.mxu0 0.0
    %936 = vmatmul.mubr.f32.gmra.mrb[0].mxu0 %v869
    %v937 = vpop.f32.mrb[0].mxu0
    %v938 = vadd.f32 0.0, %v937
    %v939 = vpop.f32.mrb[0].mxu0
    %940 = vdwg.mxu0
    %vm941 = vcmask 785408
    %v943 = vsel %vm941, %v824, 0
    %945 = vmatprep.subr.mxu0 0.0
    %946 = vmatpush1.msra.mxu0 %v832
    %947 = vmatprep.subr.mxu0 0.0
    %948 = vmatpush1.msra.mxu0 %v833
    %949 = vmatprep.subr.mxu0 0.0
    %950 = vmatpush1.msra.mxu0 %v834
    %951 = vmatprep.subr.mxu0 0.0
    %952 = vmatpush1.msra.mxu0 %v835
    %953 = vmatprep.subr.mxu0 0.0
    %954 = vmatpush1.msra.mxu0 %v836
    %955 = vmatprep.subr.mxu0 0.0
    %956 = vmatpush1.msra.mxu0 %v837
    %957 = vmatprep.subr.mxu0 0.0
    %958 = vmatpush1.msra.mxu0 %v838
    %959 = vmatprep.subr.mxu0 0.0
    %960 = vmatpush1.msra.mxu0 %v839
    %961 = vmatprep.subr.mxu0 0.0
    %962 = vmatpush1.msra.mxu0 %v840
    %963 = vmatprep.subr.mxu0 0.0
    %964 = vmatpush1.msra.mxu0 %v841
    %965 = vmatprep.subr.mxu0 0.0
    %966 = vmatpush1.msra.mxu0 %v842
    %967 = vmatprep.subr.mxu0 0.0
    %968 = vmatpush1.msra.mxu0 %v843
    %969 = vmatprep.subr.mxu0 0.0
    %970 = vmatpush1.msra.mxu0 0.0
    %971 = vmatprep.subr.mxu0 0.0
    %972 = vmatpush1.msra.mxu0 0.0
    %973 = vmatprep.subr.mxu0 0.0
    %974 = vmatpush1.msra.mxu0 0.0
    %975 = vmatprep.subr.mxu0 0.0
    %976 = vmatpush1.msra.mxu0 0.0
    %977 = vmatprep.subr.mxu0 0.0
    %978 = vmatpush1.msra.mxu0 0.0
    %979 = vmatprep.subr.mxu0 0.0
    %980 = vmatpush1.msra.mxu0 0.0
    %981 = vmatprep.subr.mxu0 0.0
    %982 = vmatpush1.msra.mxu0 0.0
    %983 = vmatprep.subr.mxu0 0.0
    %984 = vmatpush1.msra.mxu0 0.0
    %985 = vmatprep.subr.mxu0 0.0
    %986 = vmatpush1.msra.mxu0 0.0
    %987 = vmatprep.subr.mxu0 0.0
    %988 = vmatpush1.msra.mxu0 0.0
    %989 = vmatprep.subr.mxu0 0.0
    %990 = vmatpush1.msra.mxu0 0.0
    %991 = vmatprep.subr.mxu0 0.0
    %992 = vmatpush1.msra.mxu0 0.0
    %993 = vmatprep.subr.mxu0 0.0
    %994 = vmatpush1.msra.mxu0 0.0
    %995 = vmatprep.subr.mxu0 0.0
    %996 = vmatpush1.msra.mxu0 0.0
    %997 = vmatprep.subr.mxu0 0.0
    %998 = vmatpush1.msra.mxu0 0.0
    %999 = vmatprep.subr.mxu0 0.0
    %1000 = vmatpush1.msra.mxu0 0.0
    %1001 = vmatprep.subr.mxu0 0.0
    %1002 = vmatpush1.msra.mxu0 0.0
    %1003 = vmatprep.subr.mxu0 0.0
    %1004 = vmatpush1.msra.mxu0 0.0
    %1005 = vmatprep.subr.mxu0 0.0
    %1006 = vmatpush1.msra.mxu0 0.0
    %1007 = vmatprep.subr.mxu0 0.0
    %1008 = vmatpush1.msra.mxu0 0.0
    %1009 = vmatprep.mubr.f32.mxu0 0.0
    %1010 = vmatmul.mubr.f32.gmra.mrb[0].mxu0 %v943
    %v1011 = vpop.f32.mrb[0].mxu0
    %v1012 = vadd.f32 %v938, %v1011
    %v1013 = vpop.f32.mrb[0].mxu0
    %1014 = vdwg.mxu0
    %v1015 = vlaneseq
    %v1016 = vshrl.u32 %v1015, 7
    %v1017 = vsub.s32 0, %v1016
    %v1018 = vrot.slane %v848, %v1017
    %v1019 = vadd.f32 %v1012, %v1018
    %v1020 = vmax.f32 %v1019, 0.0
    %v1021 = vlaneseq
    %v1022 = vshrl.u32 %v1021, 7
    %v1023 = vsub.s32 0, %v1022
    %v1024 = vrot.slane %v857, %v1023
    %vm1025 = vcmask 523264
    %v1027 = vsel %vm1025, %v1020, 0
    %1029 = vmatprep.subr.mxu0 0.0
    %1030 = vmatpush1.msra.mxu0 %v849
    %1031 = vmatprep.subr.mxu0 0.0
    %1032 = vmatpush1.msra.mxu0 %v850
    %1033 = vmatprep.subr.mxu0 0.0
    %1034 = vmatpush1.msra.mxu0 %v851
    %1035 = vmatprep.subr.mxu0 0.0
    %1036 = vmatpush1.msra.mxu0 %v852
    %1037 = vmatprep.subr.mxu0 0.0
    %1038 = vmatpush1.msra.mxu0 %v853
    %1039 = vmatprep.subr.mxu0 0.0
    %1040 = vmatpush1.msra.mxu0 %v854
    %1041 = vmatprep.subr.mxu0 0.0
    %1042 = vmatpush1.msra.mxu0 %v855
    %1043 = vmatprep.subr.mxu0 0.0
    %1044 = vmatpush1.msra.mxu0 %v856
    %1045 = vmatprep.subr.mxu0 0.0
    %1046 = vmatpush1.msra.mxu0 0.0
    %1047 = vmatprep.subr.mxu0 0.0
    %1048 = vmatpush1.msra.mxu0 0.0
    %1049 = vmatprep.subr.mxu0 0.0
    %1050 = vmatpush1.msra.mxu0 0.0
    %1051 = vmatprep.subr.mxu0 0.0
    %1052 = vmatpush1.msra.mxu0 0.0
    %1053 = vmatprep.subr.mxu0 0.0
    %1054 = vmatpush1.msra.mxu0 0.0
    %1055 = vmatprep.subr.mxu0 0.0
    %1056 = vmatpush1.msra.mxu0 0.0
    %1057 = vmatprep.subr.mxu0 0.0
    %1058 = vmatpush1.msra.mxu0 0.0
    %1059 = vmatprep.subr.mxu0 0.0
    %1060 = vmatpush1.msra.mxu0 0.0
    %1061 = vmatprep.subr.mxu0 0.0
    %1062 = vmatpush1.msra.mxu0 0.0
    %1063 = vmatprep.subr.mxu0 0.0
    %1064 = vmatpush1.msra.mxu0 0.0
    %1065 = vmatprep.subr.mxu0 0.0
    %1066 = vmatpush1.msra.mxu0 0.0
    %1067 = vmatprep.subr.mxu0 0.0
    %1068 = vmatpush1.msra.mxu0 0.0
    %1069 = vmatprep.subr.mxu0 0.0
    %1070 = vmatpush1.msra.mxu0 0.0
    %1071 = vmatprep.subr.mxu0 0.0
    %1072 = vmatpush1.msra.mxu0 0.0
    %1073 = vmatprep.subr.mxu0 0.0
    %1074 = vmatpush1.msra.mxu0 0.0
    %1075 = vmatprep.subr.mxu0 0.0
    %1076 = vmatpush1.msra.mxu0 0.0
    %1077 = vmatprep.subr.mxu0 0.0
    %1078 = vmatpush1.msra.mxu0 0.0
    %1079 = vmatprep.subr.mxu0 0.0
    %1080 = vmatpush1.msra.mxu0 0.0
    %1081 = vmatprep.subr.mxu0 0.0
    %1082 = vmatpush1.msra.mxu0 0.0
    %1083 = vmatprep.subr.mxu0 0.0
    %1084 = vmatpush1.msra.mxu0 0.0
    %1085 = vmatprep.subr.mxu0 0.0
    %1086 = vmatpush1.msra.mxu0 0.0
    %1087 = vmatprep.subr.mxu0 0.0
    %1088 = vmatpush1.msra.mxu0 0.0
    %1089 = vmatprep.subr.mxu0 0.0
    %1090 = vmatpush1.msra.mxu0 0.0
    %1091 = vmatprep.subr.mxu0 0.0
    %1092 = vmatpush1.msra.mxu0 0.0
    %1093 = vmatprep.mubr.f32.mxu0 0.0
    %1094 = vmatmul.mubr.f32.gmra.mrb[0].mxu0 %v1027
    %v1095 = vpop.f32.mrb[0].mxu0
    %v1096 = vadd.f32 %v1024, %v1095
    %v1097 = vpop.f32.mrb[0].mxu0
    %1098 = vdwg.mxu0
    %v1099 = vmax.f32 %v1096, 0.0
    %v1100 = vlaneseq
    %v1101 = vshrl.u32 %v1100, 7
    %v1102 = vsub.s32 0, %v1101
    %v1103 = vrot.slane %v866, %v1102
    %v1105 = vsel %vm1025, %v1099, 0
    %1107 = vmatprep.subr.mxu0 0.0
    %1108 = vmatpush1.msra.mxu0 %v858
    %1109 = vmatprep.subr.mxu0 0.0
    %1110 = vmatpush1.msra.mxu0 %v859
    %1111 = vmatprep.subr.mxu0 0.0
    %1112 = vmatpush1.msra.mxu0 %v860
    %1113 = vmatprep.subr.mxu0 0.0
    %1114 = vmatpush1.msra.mxu0 %v861
    %1115 = vmatprep.subr.mxu0 0.0
    %1116 = vmatpush1.msra.mxu0 %v862
    %1117 = vmatprep.subr.mxu0 0.0
    %1118 = vmatpush1.msra.mxu0 %v863
    %1119 = vmatprep.subr.mxu0 0.0
    %1120 = vmatpush1.msra.mxu0 %v864
    %1121 = vmatprep.subr.mxu0 0.0
    %1122 = vmatpush1.msra.mxu0 %v865
    %1123 = vmatprep.subr.mxu0 0.0
    %1124 = vmatpush1.msra.mxu0 0.0
    %1125 = vmatprep.subr.mxu0 0.0
    %1126 = vmatpush1.msra.mxu0 0.0
    %1127 = vmatprep.subr.mxu0 0.0
    %1128 = vmatpush1.msra.mxu0 0.0
    %1129 = vmatprep.subr.mxu0 0.0
    %1130 = vmatpush1.msra.mxu0 0.0
    %1131 = vmatprep.subr.mxu0 0.0
    %1132 = vmatpush1.msra.mxu0 0.0
    %1133 = vmatprep.subr.mxu0 0.0
    %1134 = vmatpush1.msra.mxu0 0.0
    %1135 = vmatprep.subr.mxu0 0.0
    %1136 = vmatpush1.msra.mxu0 0.0
    %1137 = vmatprep.subr.mxu0 0.0
    %1138 = vmatpush1.msra.mxu0 0.0
    %1139 = vmatprep.subr.mxu0 0.0
    %1140 = vmatpush1.msra.mxu0 0.0
    %1141 = vmatprep.subr.mxu0 0.0
    %1142 = vmatpush1.msra.mxu0 0.0
    %1143 = vmatprep.subr.mxu0 0.0
    %1144 = vmatpush1.msra.mxu0 0.0
    %1145 = vmatprep.subr.mxu0 0.0
    %1146 = vmatpush1.msra.mxu0 0.0
    %1147 = vmatprep.subr.mxu0 0.0
    %1148 = vmatpush1.msra.mxu0 0.0
    %1149 = vmatprep.subr.mxu0 0.0
    %1150 = vmatpush1.msra.mxu0 0.0
    %1151 = vmatprep.subr.mxu0 0.0
    %1152 = vmatpush1.msra.mxu0 0.0
    %1153 = vmatprep.subr.mxu0 0.0
    %1154 = vmatpush1.msra.mxu0 0.0
    %1155 = vmatprep.subr.mxu0 0.0
    %1156 = vmatpush1.msra.mxu0 0.0
    %1157 = vmatprep.subr.mxu0 0.0
    %1158 = vmatpush1.msra.mxu0 0.0
    %1159 = vmatprep.subr.mxu0 0.0
    %1160 = vmatpush1.msra.mxu0 0.0
    %1161 = vmatprep.subr.mxu0 0.0
    %1162 = vmatpush1.msra.mxu0 0.0
    %1163 = vmatprep.subr.mxu0 0.0
    %1164 = vmatpush1.msra.mxu0 0.0
    %1165 = vmatprep.subr.mxu0 0.0
    %1166 = vmatpush1.msra.mxu0 0.0
    %1167 = vmatprep.subr.mxu0 0.0
    %1168 = vmatpush1.msra.mxu0 0.0
    %1169 = vmatprep.subr.mxu0 0.0
    %1170 = vmatpush1.msra.mxu0 0.0
    %1171 = vmatprep.mubr.f32.mxu0 0.0
    %1172 = vmatmul.mubr.f32.gmra.mrb[0].mxu0 %v1105
    %v1173 = vpop.f32.mrb[0].mxu0
    %v1174 = vadd.f32 %v1103, %v1173
    %v1175 = vpop.f32.mrb[0].mxu0
    %1176 = vdwg.mxu0
    %v1177 = vlaneseq
    %v1178 = vand.u32 %v1177, 127
    %vm1179 = vcmp.lt.s32.totalorder %v1178, 4
    %v1180 = vmax.f32 %v1174, -20.0
    %v1181 = vmin.f32 %v1180, 2.0
    %v1182 = vsel %vm1179, %v1174, %v1181
    %vm1183 = vcmask 58368
    %1184 = vst.msk [vmem:[#allocation5] sm:$0x3] %vm1183, %v1182
    // Predicated region
    $region22: #{tpu_custom_call.1} parent=1 // pred_check
      _
    $region23: #{tpu_custom_call.1} parent=1 // pred_check_branch
      %1186 = sbr.rel (0) target = $region25
    $region24: #{tpu_custom_call.1} parent=1 // pred_region
      %s1188 = ssub.s32 32, 32
      %1189 = vsyncadd [#allocation3], %s1188
      %s1191 = sshll.u32 [#allocation5], 4
      %s1192 = int_to_ptr.vmem [resolvable:$true] %s1191
      %1194 = dma.vmem_to_hbm [thread:$0]  %s1192, 32, %s4, [#allocation3]
    $region25: #{tpu_custom_call.1} parent=1 // pred_fallthru
      _
    // Predicated region
    $region26: #{tpu_custom_call.1} parent=1 // pred_check
      _
    $region27: #{tpu_custom_call.1} parent=1 // pred_check_branch
      %1196 = sbr.rel (0) target = $region29
    $region28: #{tpu_custom_call.1} parent=1 // pred_region
      %1197 = dma.done [#allocation3], 32
    $region29: #{tpu_custom_call.1} parent=1 // pred_fallthru
      _
    %1198 = vsyncpa [#allocation3], 1
    %1199 = vsyncpa [#allocation4], 1

</llo_original>
